<compile_context>
chip_gen: v7x
topology: tpu7x:2x2x1
jax: 0.10.0
libtpu: 0.0.40
codegen_flags: <defaults>
</compile_context>

<pallas_src>
import functools

import jax
import jax.numpy as jnp
from jax import lax
from jax.experimental import pallas as pl
from jax.experimental.pallas import tpu as pltpu


def _embed_kernel(x_ref, w_ref, b_ref, o_ref):
    """One (tP, E) output tile.

    x_ref: (1, H, tP, sw*C)  input strips (original dtype)
    w_ref: (H, sw*C, E)      pre-permuted weight (bf16), fully VMEM-resident
    b_ref: (1, E)            f32 bias
    o_ref: (1, tP, E)        output tile
    """
    num_kh = w_ref.shape[0]
    cdt = w_ref.dtype
    # Unrolled reduction over the kernel-height axis; per-tile cast keeps MXU
    # operands narrow (bf16) without an extra HBM cast pass in the wrapper.
    acc = jnp.dot(x_ref[0, 0].astype(cdt), w_ref[0],
                  preferred_element_type=jnp.float32)
    for kh in range(1, num_kh):
        acc += jnp.dot(x_ref[0, kh].astype(cdt), w_ref[kh],
                       preferred_element_type=jnp.float32)
    # Bias add + cast epilogue in f32, applied exactly once.
    o_ref[0] = (acc + b_ref[...]).astype(o_ref.dtype)


def prepare_proj_params(weight, bias, compute_dtype=jnp.bfloat16):
    """One-time parameter prep (hoisted out of the per-call hot path).

    Conv2d weight (E, C, H, sw) -> (H, sw*C, E) so the contraction index
    (kw*C + c) matches a plain reshape of the NHWC input and kh becomes the
    in-kernel reduction loop.
    """
    E, C, H, sw = weight.shape
    w_r = jnp.transpose(weight, (2, 3, 1, 0)).reshape(H, sw * C, E)
    return w_r.astype(compute_dtype), bias.reshape(1, E).astype(jnp.float32)


@functools.partial(
    jax.jit, static_argnames=("strip_width", "out_dtype", "vmem_limit_bytes"))
def input_embedding(x, w_r, b2, *, strip_width, out_dtype=None,
                    vmem_limit_bytes=48 * 1024 * 1024):
    """
    x:   (B, H, W, C) spectrogram (layout the torch module's forward takes)
    w_r: (H, sw*C, E) pre-permuted Conv2d weight from prepare_proj_params
    b2:  (1, E)       f32 bias
    returns (B, P, E), P = W // strip_width  (== torch (B, seq, embed)).

    Pass out_dtype=jnp.bfloat16 when the consumer accepts it to halve output
    HBM writeback; the default preserves x.dtype (module semantics).
    """
    B, H, W, C = x.shape
    sw = strip_width
    P = W // sw
    if W % sw:  # torch VALID conv silently drops trailing columns; match it.
        x = x[:, :, :P * sw, :]
    swc = sw * C
    Kh, swc_w, E = w_r.shape
    assert Kh == H and swc_w == swc, (w_r.shape, (H, swc))
    K = H * swc
    out_dtype = x.dtype if out_dtype is None else out_dtype

    # Metadata-only reshape: x4[b, kh, p, kw*C + c] == x[b, kh, p*sw + kw, c].
    x4 = x.reshape(B, H, P, swc)

    x_isz = jnp.dtype(x.dtype).itemsize
    w_isz = jnp.dtype(w_r.dtype).itemsize
    o_isz = jnp.dtype(out_dtype).itemsize

    # ---- Tile selection over the strip (seq) axis ---------------------------
    def vmem_bytes(tp_):
        return (2 * tp_ * K * x_isz      # double-buffered input blocks
                + 2 * K * E * w_isz      # resident weight (conservative x2)
                + 2 * tp_ * E * o_isz    # double-buffered output blocks
                + tp_ * E * 4            # f32 accumulator (vregs / VMEM)
                + 2 * E * 4)             # bias

    budget = 36 * 1024 * 1024            # leaves headroom inside v7x's 64 MiB
    # TODO(synk): for very large weights (K*E bf16 >> 16 MiB) add an E/K-tiled
    # reduction grid instead of keeping the whole weight VMEM-resident.

    tp = min(P, 512)
    if tp != P:
        tp -= tp % 8                     # (8,128) rule when not the full dim
    if tp > 8 and vmem_bytes(tp) > budget:
        tp -= tp % 8
        while tp > 8 and vmem_bytes(tp) > budget:
            tp -= 8
        tp = max(tp, 8)
    # v7x has 2 TensorCores: ensure >= 2 parallel grid blocks when possible.
    if B * ((P + tp - 1) // tp) < 2 and P >= 16:
        tp = max(8, ((P // 2 + 7) // 8) * 8)

    grid = (B, pl.cdiv(P, tp))

    flops = 2 * B * P * K * E
    bytes_accessed = (B * P * K * x_isz      # activations, read exactly once
                      + K * E * w_isz        # weight, DMA'd exactly once
                      + E * 4                # bias
                      + B * P * E * o_isz)   # output, written exactly once

    return pl.pallas_call(
        _embed_kernel,
        out_shape=jax.ShapeDtypeStruct((B, P, E), out_dtype),
        grid_spec=pltpu.PrefetchScalarGridSpec(
            num_scalar_prefetch=0,
            grid=grid,
            in_specs=[
                pl.BlockSpec((1, H, tp, swc), lambda b, p: (b, 0, p, 0)),
                # Whole weight, constant block index -> fetched once and kept
                # VMEM-resident for the entire kernel.
                pl.BlockSpec((H, swc, E), lambda b, p: (0, 0, 0)),
                pl.BlockSpec((1, E), lambda b, p: (0, 0)),
            ],
            out_specs=pl.BlockSpec((1, tp, E), lambda b, p: (b, p, 0)),
        ),
        compiler_params=pltpu.CompilerParams(
            dimension_semantics=("parallel", "parallel"),
            vmem_limit_bytes=vmem_limit_bytes,
        ),
        cost_estimate=pl.CostEstimate(
            flops=flops, transcendentals=0, bytes_accessed=bytes_accessed),
    )(x4, w_r, b2)


def _reference(x, weight, bias, strip_width):
    """Plain-JAX reference mirroring the torch forward exactly (f32)."""
    x_nchw = jnp.transpose(x, (0, 3, 1, 2))                      # (B, C, H, W)
    y = lax.conv_general_dilated(
        x_nchw, weight,
        window_strides=(strip_width, strip_width),
        padding="VALID",
        dimension_numbers=("NCHW", "OIHW", "NCHW"),
    )                                                            # (B, E, 1, P)
    y = y + bias.reshape(1, -1, 1, 1)
    B, E = y.shape[0], y.shape[1]
    y = y.reshape(B, E, -1)                                      # flatten(2)
    return jnp.transpose(y, (0, 2, 1))                           # (B, P, E)


if __name__ == "__main__":
    # Small shapes consistent with the module.
    B, C, H, W = 2, 4, 16, 16
    strip_width = 4
    E = C * H * strip_width  # 256
    P = W // strip_width     # 4

    key = jax.random.PRNGKey(0)
    kx, kw, kb = jax.random.split(key, 3)

    x = jax.random.normal(kx, (B, H, W, C), dtype=jnp.float32)
    weight = jax.random.normal(kw, (E, C, H, strip_width), dtype=jnp.float32) * 0.02
    bias = jax.random.normal(kb, (E,), dtype=jnp.float32) * 0.01

    # One-time parameter prep (outside the per-step hot path).
    w_r, b2 = prepare_proj_params(weight, bias, compute_dtype=jnp.bfloat16)
    w_r, b2 = jax.block_until_ready((w_r, b2))

    y = input_embedding(x, w_r, b2, strip_width=strip_width)
    y = jax.block_until_ready(y)

    y_ref = _reference(x, weight, bias, strip_width)
    assert y.shape == (B, P, E), y.shape
    # bf16 operands with f32 accumulation vs exact-f32 conv reference.
    assert jnp.allclose(y.astype(jnp.float32), y_ref, atol=2e-2, rtol=2e-2), \
        float(jnp.max(jnp.abs(y.astype(jnp.float32) - y_ref)))

    print("KERNEL_OK")
</pallas_src>

<mosaic_0001>
module attributes {stable_mosaic.version = 11 : i64} {
  func.func @_embed_kernel(%arg0: i32, %arg1: i32, %arg2: memref<1x16x4x16xf32, #tpu.memory_space<vmem>>, %arg3: memref<16x16x256xbf16, #tpu.memory_space<vmem>>, %arg4: memref<1x256xf32, #tpu.memory_space<vmem>>, %arg5: memref<1x4x256xf32, #tpu.memory_space<vmem>>) attributes {dimension_semantics = [#tpu.dimension_semantics<parallel>, #tpu.dimension_semantics<parallel>], iteration_bounds = array<i64: 2, 1>, scalar_prefetch = 0 : i64, scratch_operands = 0 : i64, tpu.core_type = #tpu.core_type<tc>, window_params = [{transform_indices = @transform_0, window_bounds = array<i64: 1, 16, 4, 16>}, {pipeline_mode = #tpu.pipeline_mode<synchronous>, transform_indices = @transform_1, window_bounds = array<i64: 16, 16, 256>}, {pipeline_mode = #tpu.pipeline_mode<synchronous>, transform_indices = @transform_2, window_bounds = array<i64: 1, 256>}, {transform_indices = @transform_3, window_bounds = array<i64: 1, 4, 256>}]} {
    %c0 = arith.constant 0 : index
    %c0_0 = arith.constant 0 : index
    %c0_1 = arith.constant 0 : index
    %c0_2 = arith.constant 0 : index
    %0 = vector.load %arg2[%c0, %c0_0, %c0_1, %c0_2] : memref<1x16x4x16xf32, #tpu.memory_space<vmem>>, vector<1x1x4x16xf32>
    %1 = vector.shape_cast %0 : vector<1x1x4x16xf32> to vector<4x16xf32>
    %2 = arith.truncf %1 : vector<4x16xf32> to vector<4x16xbf16>
    %c0_3 = arith.constant 0 : index
    %c0_4 = arith.constant 0 : index
    %c0_5 = arith.constant 0 : index
    %3 = vector.load %arg3[%c0_3, %c0_4, %c0_5] : memref<16x16x256xbf16, #tpu.memory_space<vmem>>, vector<1x16x256xbf16>
    %4 = vector.shape_cast %3 : vector<1x16x256xbf16> to vector<16x256xbf16>
    %cst = arith.constant dense<0.000000e+00> : vector<4x256xf32>
    %5 = tpu.matmul %2, %4, %cst {dimension_numbers = #tpu.dot_dimension_numbers<[1], [0], [0], [1], [0, 0, 1, 1], [], []>} : vector<4x16xbf16>, vector<16x256xbf16>, vector<4x256xf32> -> vector<4x256xf32>
    %c0_6 = arith.constant 0 : index
    %c1 = arith.constant 1 : index
    %c0_7 = arith.constant 0 : index
    %c0_8 = arith.constant 0 : index
    %6 = vector.load %arg2[%c0_6, %c1, %c0_7, %c0_8] : memref<1x16x4x16xf32, #tpu.memory_space<vmem>>, vector<1x1x4x16xf32>
    %7 = vector.shape_cast %6 : vector<1x1x4x16xf32> to vector<4x16xf32>
    %8 = arith.truncf %7 : vector<4x16xf32> to vector<4x16xbf16>
    %c1_9 = arith.constant 1 : index
    %c0_10 = arith.constant 0 : index
    %c0_11 = arith.constant 0 : index
    %9 = vector.load %arg3[%c1_9, %c0_10, %c0_11] : memref<16x16x256xbf16, #tpu.memory_space<vmem>>, vector<1x16x256xbf16>
    %10 = vector.shape_cast %9 : vector<1x16x256xbf16> to vector<16x256xbf16>
    %cst_12 = arith.constant dense<0.000000e+00> : vector<4x256xf32>
    %11 = tpu.matmul %8, %10, %cst_12 {dimension_numbers = #tpu.dot_dimension_numbers<[1], [0], [0], [1], [0, 0, 1, 1], [], []>} : vector<4x16xbf16>, vector<16x256xbf16>, vector<4x256xf32> -> vector<4x256xf32>
    %12 = arith.addf %5, %11 : vector<4x256xf32>
    %c0_13 = arith.constant 0 : index
    %c2 = arith.constant 2 : index
    %c0_14 = arith.constant 0 : index
    %c0_15 = arith.constant 0 : index
    %13 = vector.load %arg2[%c0_13, %c2, %c0_14, %c0_15] : memref<1x16x4x16xf32, #tpu.memory_space<vmem>>, vector<1x1x4x16xf32>
    %14 = vector.shape_cast %13 : vector<1x1x4x16xf32> to vector<4x16xf32>
    %15 = arith.truncf %14 : vector<4x16xf32> to vector<4x16xbf16>
    %c2_16 = arith.constant 2 : index
    %c0_17 = arith.constant 0 : index
    %c0_18 = arith.constant 0 : index
    %16 = vector.load %arg3[%c2_16, %c0_17, %c0_18] : memref<16x16x256xbf16, #tpu.memory_space<vmem>>, vector<1x16x256xbf16>
    %17 = vector.shape_cast %16 : vector<1x16x256xbf16> to vector<16x256xbf16>
    %cst_19 = arith.constant dense<0.000000e+00> : vector<4x256xf32>
    %18 = tpu.matmul %15, %17, %cst_19 {dimension_numbers = #tpu.dot_dimension_numbers<[1], [0], [0], [1], [0, 0, 1, 1], [], []>} : vector<4x16xbf16>, vector<16x256xbf16>, vector<4x256xf32> -> vector<4x256xf32>
    %19 = arith.addf %12, %18 : vector<4x256xf32>
    %c0_20 = arith.constant 0 : index
    %c3 = arith.constant 3 : index
    %c0_21 = arith.constant 0 : index
    %c0_22 = arith.constant 0 : index
    %20 = vector.load %arg2[%c0_20, %c3, %c0_21, %c0_22] : memref<1x16x4x16xf32, #tpu.memory_space<vmem>>, vector<1x1x4x16xf32>
    %21 = vector.shape_cast %20 : vector<1x1x4x16xf32> to vector<4x16xf32>
    %22 = arith.truncf %21 : vector<4x16xf32> to vector<4x16xbf16>
    %c3_23 = arith.constant 3 : index
    %c0_24 = arith.constant 0 : index
    %c0_25 = arith.constant 0 : index
    %23 = vector.load %arg3[%c3_23, %c0_24, %c0_25] : memref<16x16x256xbf16, #tpu.memory_space<vmem>>, vector<1x16x256xbf16>
    %24 = vector.shape_cast %23 : vector<1x16x256xbf16> to vector<16x256xbf16>
    %cst_26 = arith.constant dense<0.000000e+00> : vector<4x256xf32>
    %25 = tpu.matmul %22, %24, %cst_26 {dimension_numbers = #tpu.dot_dimension_numbers<[1], [0], [0], [1], [0, 0, 1, 1], [], []>} : vector<4x16xbf16>, vector<16x256xbf16>, vector<4x256xf32> -> vector<4x256xf32>
    %26 = arith.addf %19, %25 : vector<4x256xf32>
    %c0_27 = arith.constant 0 : index
    %c4 = arith.constant 4 : index
    %c0_28 = arith.constant 0 : index
    %c0_29 = arith.constant 0 : index
    %27 = vector.load %arg2[%c0_27, %c4, %c0_28, %c0_29] : memref<1x16x4x16xf32, #tpu.memory_space<vmem>>, vector<1x1x4x16xf32>
    %28 = vector.shape_cast %27 : vector<1x1x4x16xf32> to vector<4x16xf32>
    %29 = arith.truncf %28 : vector<4x16xf32> to vector<4x16xbf16>
    %c4_30 = arith.constant 4 : index
    %c0_31 = arith.constant 0 : index
    %c0_32 = arith.constant 0 : index
    %30 = vector.load %arg3[%c4_30, %c0_31, %c0_32] : memref<16x16x256xbf16, #tpu.memory_space<vmem>>, vector<1x16x256xbf16>
    %31 = vector.shape_cast %30 : vector<1x16x256xbf16> to vector<16x256xbf16>
    %cst_33 = arith.constant dense<0.000000e+00> : vector<4x256xf32>
    %32 = tpu.matmul %29, %31, %cst_33 {dimension_numbers = #tpu.dot_dimension_numbers<[1], [0], [0], [1], [0, 0, 1, 1], [], []>} : vector<4x16xbf16>, vector<16x256xbf16>, vector<4x256xf32> -> vector<4x256xf32>
    %33 = arith.addf %26, %32 : vector<4x256xf32>
    %c0_34 = arith.constant 0 : index
    %c5 = arith.constant 5 : index
    %c0_35 = arith.constant 0 : index
    %c0_36 = arith.constant 0 : index
    %34 = vector.load %arg2[%c0_34, %c5, %c0_35, %c0_36] : memref<1x16x4x16xf32, #tpu.memory_space<vmem>>, vector<1x1x4x16xf32>
    %35 = vector.shape_cast %34 : vector<1x1x4x16xf32> to vector<4x16xf32>
    %36 = arith.truncf %35 : vector<4x16xf32> to vector<4x16xbf16>
    %c5_37 = arith.constant 5 : index
    %c0_38 = arith.constant 0 : index
    %c0_39 = arith.constant 0 : index
    %37 = vector.load %arg3[%c5_37, %c0_38, %c0_39] : memref<16x16x256xbf16, #tpu.memory_space<vmem>>, vector<1x16x256xbf16>
    %38 = vector.shape_cast %37 : vector<1x16x256xbf16> to vector<16x256xbf16>
    %cst_40 = arith.constant dense<0.000000e+00> : vector<4x256xf32>
    %39 = tpu.matmul %36, %38, %cst_40 {dimension_numbers = #tpu.dot_dimension_numbers<[1], [0], [0], [1], [0, 0, 1, 1], [], []>} : vector<4x16xbf16>, vector<16x256xbf16>, vector<4x256xf32> -> vector<4x256xf32>
    %40 = arith.addf %33, %39 : vector<4x256xf32>
    %c0_41 = arith.constant 0 : index
    %c6 = arith.constant 6 : index
    %c0_42 = arith.constant 0 : index
    %c0_43 = arith.constant 0 : index
    %41 = vector.load %arg2[%c0_41, %c6, %c0_42, %c0_43] : memref<1x16x4x16xf32, #tpu.memory_space<vmem>>, vector<1x1x4x16xf32>
    %42 = vector.shape_cast %41 : vector<1x1x4x16xf32> to vector<4x16xf32>
    %43 = arith.truncf %42 : vector<4x16xf32> to vector<4x16xbf16>
    %c6_44 = arith.constant 6 : index
    %c0_45 = arith.constant 0 : index
    %c0_46 = arith.constant 0 : index
    %44 = vector.load %arg3[%c6_44, %c0_45, %c0_46] : memref<16x16x256xbf16, #tpu.memory_space<vmem>>, vector<1x16x256xbf16>
    %45 = vector.shape_cast %44 : vector<1x16x256xbf16> to vector<16x256xbf16>
    %cst_47 = arith.constant dense<0.000000e+00> : vector<4x256xf32>
    %46 = tpu.matmul %43, %45, %cst_47 {dimension_numbers = #tpu.dot_dimension_numbers<[1], [0], [0], [1], [0, 0, 1, 1], [], []>} : vector<4x16xbf16>, vector<16x256xbf16>, vector<4x256xf32> -> vector<4x256xf32>
    %47 = arith.addf %40, %46 : vector<4x256xf32>
    %c0_48 = arith.constant 0 : index
    %c7 = arith.constant 7 : index
    %c0_49 = arith.constant 0 : index
    %c0_50 = arith.constant 0 : index
    %48 = vector.load %arg2[%c0_48, %c7, %c0_49, %c0_50] : memref<1x16x4x16xf32, #tpu.memory_space<vmem>>, vector<1x1x4x16xf32>
    %49 = vector.shape_cast %48 : vector<1x1x4x16xf32> to vector<4x16xf32>
    %50 = arith.truncf %49 : vector<4x16xf32> to vector<4x16xbf16>
    %c7_51 = arith.constant 7 : index
    %c0_52 = arith.constant 0 : index
    %c0_53 = arith.constant 0 : index
    %51 = vector.load %arg3[%c7_51, %c0_52, %c0_53] : memref<16x16x256xbf16, #tpu.memory_space<vmem>>, vector<1x16x256xbf16>
    %52 = vector.shape_cast %51 : vector<1x16x256xbf16> to vector<16x256xbf16>
    %cst_54 = arith.constant dense<0.000000e+00> : vector<4x256xf32>
    %53 = tpu.matmul %50, %52, %cst_54 {dimension_numbers = #tpu.dot_dimension_numbers<[1], [0], [0], [1], [0, 0, 1, 1], [], []>} : vector<4x16xbf16>, vector<16x256xbf16>, vector<4x256xf32> -> vector<4x256xf32>
    %54 = arith.addf %47, %53 : vector<4x256xf32>
    %c0_55 = arith.constant 0 : index
    %c8 = arith.constant 8 : index
    %c0_56 = arith.constant 0 : index
    %c0_57 = arith.constant 0 : index
    %55 = vector.load %arg2[%c0_55, %c8, %c0_56, %c0_57] : memref<1x16x4x16xf32, #tpu.memory_space<vmem>>, vector<1x1x4x16xf32>
    %56 = vector.shape_cast %55 : vector<1x1x4x16xf32> to vector<4x16xf32>
    %57 = arith.truncf %56 : vector<4x16xf32> to vector<4x16xbf16>
    %c8_58 = arith.constant 8 : index
    %c0_59 = arith.constant 0 : index
    %c0_60 = arith.constant 0 : index
    %58 = vector.load %arg3[%c8_58, %c0_59, %c0_60] : memref<16x16x256xbf16, #tpu.memory_space<vmem>>, vector<1x16x256xbf16>
    %59 = vector.shape_cast %58 : vector<1x16x256xbf16> to vector<16x256xbf16>
    %cst_61 = arith.constant dense<0.000000e+00> : vector<4x256xf32>
    %60 = tpu.matmul %57, %59, %cst_61 {dimension_numbers = #tpu.dot_dimension_numbers<[1], [0], [0], [1], [0, 0, 1, 1], [], []>} : vector<4x16xbf16>, vector<16x256xbf16>, vector<4x256xf32> -> vector<4x256xf32>
    %61 = arith.addf %54, %60 : vector<4x256xf32>
    %c0_62 = arith.constant 0 : index
    %c9 = arith.constant 9 : index
    %c0_63 = arith.constant 0 : index
    %c0_64 = arith.constant 0 : index
    %62 = vector.load %arg2[%c0_62, %c9, %c0_63, %c0_64] : memref<1x16x4x16xf32, #tpu.memory_space<vmem>>, vector<1x1x4x16xf32>
    %63 = vector.shape_cast %62 : vector<1x1x4x16xf32> to vector<4x16xf32>
    %64 = arith.truncf %63 : vector<4x16xf32> to vector<4x16xbf16>
    %c9_65 = arith.constant 9 : index
    %c0_66 = arith.constant 0 : index
    %c0_67 = arith.constant 0 : index
    %65 = vector.load %arg3[%c9_65, %c0_66, %c0_67] : memref<16x16x256xbf16, #tpu.memory_space<vmem>>, vector<1x16x256xbf16>
    %66 = vector.shape_cast %65 : vector<1x16x256xbf16> to vector<16x256xbf16>
    %cst_68 = arith.constant dense<0.000000e+00> : vector<4x256xf32>
    %67 = tpu.matmul %64, %66, %cst_68 {dimension_numbers = #tpu.dot_dimension_numbers<[1], [0], [0], [1], [0, 0, 1, 1], [], []>} : vector<4x16xbf16>, vector<16x256xbf16>, vector<4x256xf32> -> vector<4x256xf32>
    %68 = arith.addf %61, %67 : vector<4x256xf32>
    %c0_69 = arith.constant 0 : index
    %c10 = arith.constant 10 : index
    %c0_70 = arith.constant 0 : index
    %c0_71 = arith.constant 0 : index
    %69 = vector.load %arg2[%c0_69, %c10, %c0_70, %c0_71] : memref<1x16x4x16xf32, #tpu.memory_space<vmem>>, vector<1x1x4x16xf32>
    %70 = vector.shape_cast %69 : vector<1x1x4x16xf32> to vector<4x16xf32>
    %71 = arith.truncf %70 : vector<4x16xf32> to vector<4x16xbf16>
    %c10_72 = arith.constant 10 : index
    %c0_73 = arith.constant 0 : index
    %c0_74 = arith.constant 0 : index
    %72 = vector.load %arg3[%c10_72, %c0_73, %c0_74] : memref<16x16x256xbf16, #tpu.memory_space<vmem>>, vector<1x16x256xbf16>
    %73 = vector.shape_cast %72 : vector<1x16x256xbf16> to vector<16x256xbf16>
    %cst_75 = arith.constant dense<0.000000e+00> : vector<4x256xf32>
    %74 = tpu.matmul %71, %73, %cst_75 {dimension_numbers = #tpu.dot_dimension_numbers<[1], [0], [0], [1], [0, 0, 1, 1], [], []>} : vector<4x16xbf16>, vector<16x256xbf16>, vector<4x256xf32> -> vector<4x256xf32>
    %75 = arith.addf %68, %74 : vector<4x256xf32>
    %c0_76 = arith.constant 0 : index
    %c11 = arith.constant 11 : index
    %c0_77 = arith.constant 0 : index
    %c0_78 = arith.constant 0 : index
    %76 = vector.load %arg2[%c0_76, %c11, %c0_77, %c0_78] : memref<1x16x4x16xf32, #tpu.memory_space<vmem>>, vector<1x1x4x16xf32>
    %77 = vector.shape_cast %76 : vector<1x1x4x16xf32> to vector<4x16xf32>
    %78 = arith.truncf %77 : vector<4x16xf32> to vector<4x16xbf16>
    %c11_79 = arith.constant 11 : index
    %c0_80 = arith.constant 0 : index
    %c0_81 = arith.constant 0 : index
    %79 = vector.load %arg3[%c11_79, %c0_80, %c0_81] : memref<16x16x256xbf16, #tpu.memory_space<vmem>>, vector<1x16x256xbf16>
    %80 = vector.shape_cast %79 : vector<1x16x256xbf16> to vector<16x256xbf16>
    %cst_82 = arith.constant dense<0.000000e+00> : vector<4x256xf32>
    %81 = tpu.matmul %78, %80, %cst_82 {dimension_numbers = #tpu.dot_dimension_numbers<[1], [0], [0], [1], [0, 0, 1, 1], [], []>} : vector<4x16xbf16>, vector<16x256xbf16>, vector<4x256xf32> -> vector<4x256xf32>
    %82 = arith.addf %75, %81 : vector<4x256xf32>
    %c0_83 = arith.constant 0 : index
    %c12 = arith.constant 12 : index
    %c0_84 = arith.constant 0 : index
    %c0_85 = arith.constant 0 : index
    %83 = vector.load %arg2[%c0_83, %c12, %c0_84, %c0_85] : memref<1x16x4x16xf32, #tpu.memory_space<vmem>>, vector<1x1x4x16xf32>
    %84 = vector.shape_cast %83 : vector<1x1x4x16xf32> to vector<4x16xf32>
    %85 = arith.truncf %84 : vector<4x16xf32> to vector<4x16xbf16>
    %c12_86 = arith.constant 12 : index
    %c0_87 = arith.constant 0 : index
    %c0_88 = arith.constant 0 : index
    %86 = vector.load %arg3[%c12_86, %c0_87, %c0_88] : memref<16x16x256xbf16, #tpu.memory_space<vmem>>, vector<1x16x256xbf16>
    %87 = vector.shape_cast %86 : vector<1x16x256xbf16> to vector<16x256xbf16>
    %cst_89 = arith.constant dense<0.000000e+00> : vector<4x256xf32>
    %88 = tpu.matmul %85, %87, %cst_89 {dimension_numbers = #tpu.dot_dimension_numbers<[1], [0], [0], [1], [0, 0, 1, 1], [], []>} : vector<4x16xbf16>, vector<16x256xbf16>, vector<4x256xf32> -> vector<4x256xf32>
    %89 = arith.addf %82, %88 : vector<4x256xf32>
    %c0_90 = arith.constant 0 : index
    %c13 = arith.constant 13 : index
    %c0_91 = arith.constant 0 : index
    %c0_92 = arith.constant 0 : index
    %90 = vector.load %arg2[%c0_90, %c13, %c0_91, %c0_92] : memref<1x16x4x16xf32, #tpu.memory_space<vmem>>, vector<1x1x4x16xf32>
    %91 = vector.shape_cast %90 : vector<1x1x4x16xf32> to vector<4x16xf32>
    %92 = arith.truncf %91 : vector<4x16xf32> to vector<4x16xbf16>
    %c13_93 = arith.constant 13 : index
    %c0_94 = arith.constant 0 : index
    %c0_95 = arith.constant 0 : index
    %93 = vector.load %arg3[%c13_93, %c0_94, %c0_95] : memref<16x16x256xbf16, #tpu.memory_space<vmem>>, vector<1x16x256xbf16>
    %94 = vector.shape_cast %93 : vector<1x16x256xbf16> to vector<16x256xbf16>
    %cst_96 = arith.constant dense<0.000000e+00> : vector<4x256xf32>
    %95 = tpu.matmul %92, %94, %cst_96 {dimension_numbers = #tpu.dot_dimension_numbers<[1], [0], [0], [1], [0, 0, 1, 1], [], []>} : vector<4x16xbf16>, vector<16x256xbf16>, vector<4x256xf32> -> vector<4x256xf32>
    %96 = arith.addf %89, %95 : vector<4x256xf32>
    %c0_97 = arith.constant 0 : index
    %c14 = arith.constant 14 : index
    %c0_98 = arith.constant 0 : index
    %c0_99 = arith.constant 0 : index
    %97 = vector.load %arg2[%c0_97, %c14, %c0_98, %c0_99] : memref<1x16x4x16xf32, #tpu.memory_space<vmem>>, vector<1x1x4x16xf32>
    %98 = vector.shape_cast %97 : vector<1x1x4x16xf32> to vector<4x16xf32>
    %99 = arith.truncf %98 : vector<4x16xf32> to vector<4x16xbf16>
    %c14_100 = arith.constant 14 : index
    %c0_101 = arith.constant 0 : index
    %c0_102 = arith.constant 0 : index
    %100 = vector.load %arg3[%c14_100, %c0_101, %c0_102] : memref<16x16x256xbf16, #tpu.memory_space<vmem>>, vector<1x16x256xbf16>
    %101 = vector.shape_cast %100 : vector<1x16x256xbf16> to vector<16x256xbf16>
    %cst_103 = arith.constant dense<0.000000e+00> : vector<4x256xf32>
    %102 = tpu.matmul %99, %101, %cst_103 {dimension_numbers = #tpu.dot_dimension_numbers<[1], [0], [0], [1], [0, 0, 1, 1], [], []>} : vector<4x16xbf16>, vector<16x256xbf16>, vector<4x256xf32> -> vector<4x256xf32>
    %103 = arith.addf %96, %102 : vector<4x256xf32>
    %c0_104 = arith.constant 0 : index
    %c15 = arith.constant 15 : index
    %c0_105 = arith.constant 0 : index
    %c0_106 = arith.constant 0 : index
    %104 = vector.load %arg2[%c0_104, %c15, %c0_105, %c0_106] : memref<1x16x4x16xf32, #tpu.memory_space<vmem>>, vector<1x1x4x16xf32>
    %105 = vector.shape_cast %104 : vector<1x1x4x16xf32> to vector<4x16xf32>
    %106 = arith.truncf %105 : vector<4x16xf32> to vector<4x16xbf16>
    %c15_107 = arith.constant 15 : index
    %c0_108 = arith.constant 0 : index
    %c0_109 = arith.constant 0 : index
    %107 = vector.load %arg3[%c15_107, %c0_108, %c0_109] : memref<16x16x256xbf16, #tpu.memory_space<vmem>>, vector<1x16x256xbf16>
    %108 = vector.shape_cast %107 : vector<1x16x256xbf16> to vector<16x256xbf16>
    %cst_110 = arith.constant dense<0.000000e+00> : vector<4x256xf32>
    %109 = tpu.matmul %106, %108, %cst_110 {dimension_numbers = #tpu.dot_dimension_numbers<[1], [0], [0], [1], [0, 0, 1, 1], [], []>} : vector<4x16xbf16>, vector<16x256xbf16>, vector<4x256xf32> -> vector<4x256xf32>
    %110 = arith.addf %103, %109 : vector<4x256xf32>
    %c0_111 = arith.constant 0 : index
    %c0_112 = arith.constant 0 : index
    %111 = vector.load %arg4[%c0_111, %c0_112] : memref<1x256xf32, #tpu.memory_space<vmem>>, vector<1x256xf32>
    %112 = vector.broadcast %111 : vector<1x256xf32> to vector<4x256xf32>
    %113 = arith.addf %110, %112 : vector<4x256xf32>
    %c0_113 = arith.constant 0 : index
    %c0_114 = arith.constant 0 : index
    %c0_115 = arith.constant 0 : index
    %114 = vector.load %arg5[%c0_113, %c0_114, %c0_115] : memref<1x4x256xf32, #tpu.memory_space<vmem>>, vector<1x4x256xf32>
    %115 = vector.shape_cast %114 : vector<1x4x256xf32> to vector<4x256xf32>
    %116 = vector.shape_cast %113 : vector<4x256xf32> to vector<1x4x256xf32>
    tpu.vector_store %arg5[%c0_113, %c0_114, %c0_115], %116 {strides = array<i32>} : memref<1x4x256xf32, #tpu.memory_space<vmem>>, vector<1x4x256xf32>,
    return
  }
  func.func @transform_0(%arg0: i32, %arg1: i32) -> (i32, i32, i32, i32) {
    %c0_i32 = arith.constant 0 : i32
    %c0_i32_0 = arith.constant 0 : i32
    %c0_i32_1 = arith.constant 0 : i32
    return %arg0, %c0_i32, %arg1, %c0_i32_0 : i32, i32, i32, i32
  }
  func.func @transform_1(%arg0: i32, %arg1: i32) -> (i32, i32, i32) {
    %c0_i32 = arith.constant 0 : i32
    %c0_i32_0 = arith.constant 0 : i32
    %c0_i32_1 = arith.constant 0 : i32
    %c0_i32_2 = arith.constant 0 : i32
    return %c0_i32, %c0_i32_0, %c0_i32_1 : i32, i32, i32
  }
  func.func @transform_2(%arg0: i32, %arg1: i32) -> (i32, i32) {
    %c0_i32 = arith.constant 0 : i32
    %c0_i32_0 = arith.constant 0 : i32
    %c0_i32_1 = arith.constant 0 : i32
    return %c0_i32, %c0_i32_0 : i32, i32
  }
  func.func @transform_3(%arg0: i32, %arg1: i32) -> (i32, i32, i32) {
    %c0_i32 = arith.constant 0 : i32
    %c0_i32_0 = arith.constant 0 : i32
    return %arg0, %arg1, %c0_i32 : i32, i32, i32
  }
}

</mosaic_0001>

<llo_original>
// kernel: input_embedding.1
$region0: #{input_embedding.1}
  #allocation0 [shape = 'u32[]', space=smem, size = 0x4, offset = 0x4, fixed_abs, tag = 'smem constant byte address 0x4 - core index']
  #allocation1 [shape = 'u32[144,128]{1,0:T(1,128)}', space=vmem, size = 0x12000, scoped, tag = 'internal scratch']
  %s0 = inlined_call_operand.vmem [shape: f32[2,16,4,16], index: 0, kind: input, shape index: {}]
  %s1 = inlined_call_operand.vmem [shape: bf16[16,16,256], index: 1, kind: input, shape index: {}]
  %s2 = inlined_call_operand.vmem [shape: f32[1,256], index: 2, kind: input, shape index: {}]
  %s3 = inlined_call_operand.hbm [shape: f32[2,4,256], index: 3, kind: output, shape index: {}]
  %s4 = sld [smem:[#allocation0]]
  $region45: #{input_embedding.1} parent=0
    _
  %s6 = ssub.s32 1, %s4
  %s7 = scalar_select 0, %s6, %s4
  $region1: #{input_embedding.1} parent=0
    #allocation2 [shape = 'u8[8192]{0}', space=vmem, size = 0x2000, scoped, tag = 'output window, operand 0']
    #allocation3 [shape = 's32[2]{0}', space=sflag, size = 0x8, scoped, tag = 'scoped memory for input_embedding.1']
    %8 = vsyncpa [#allocation3], 0
    %s9 = scalar_lea.sflag [#allocation3], 1
    %10 = vsyncpa %s9, 0
    loop: start=0, step=1, limit=4
    $region2: #{input_embedding.1} parent=1 // loop_pre_header
      _
    $region3: #{input_embedding.1} parent=1 // loop_header
      %s12 = sphi 0, %s16
      %p13 = scmp.ge.s32.totalorder %s12, 4
      %s19 = sphi 0, %s31
      %s20 = sphi 0, %s27
      %s21 = sphi 0, %s19
      %s22 = sphi 0, %s20
      %s23 = sphi 0, %s21
      %s24 = sphi 0, %s22
      %s36 = sphi 0, %s38
      %s39 = sphi 0, %s36
      %s40 = sphi 0, %s39
      %s56 = sphi 0, %s40
      %s60 = sphi 0, %s60
      %s62 = sphi 0, %s60
      %s63 = sphi 0, %s62
      %s77 = sphi 0, %s63
      %s81 = sphi 0, %s81
      %s83 = sphi 0, %s81
      %s84 = sphi 0, %s83
      %s98 = sphi 0, %s84
      %s106 = sphi 0, %s108
      %s109 = sphi 0, %s106
      %s110 = sphi 0, %s109
      %s126 = sphi 0, %s110
    $region4: #{input_embedding.1} parent=1 // loop_header_branch
      %15 = sbr.rel (%p13) target = $region8
    $region5: #{input_embedding.1} parent=1 // loop_body
      %s17 = ssub.s32 %s12, 1
      %s18 = ssub.s32 %s12, 2
      %s25 = sadd.s32 1, %s20
      %p26 = scmp.ge.s32.totalorder %s25, 1
      %s27 = scalar_select %p26, 0, %s25
      %s28 = sadd.s32 1, %s19
      %s29 = scalar_select %p26, %s28, %s19
      %p30 = scmp.ge.s32.totalorder %s29, 2
      %s31 = scalar_select %p30, 0, %s29
      %s32 = ssub.s32 %s19, %s31
      %s33 = ssub.s32 %s20, %s27
      %s34 = sor.u32 %s32, %s33
      %p35 = scmp.eq.s32.totalorder %s34, 0
      %s37 = sadd.s32 %s36, 1
      %s38 = scalar_select %p35, %s36, %s37
      %p41 = pneg %p35
      %p42 = scmp.eq.s32.totalorder %s12, 1
      %p43 = por %p41, %p42
      %p44 = scmp.ne.s32.totalorder %s36, %s39
      %p45 = scmp.eq.s32.totalorder %s12, 0
      %p46 = por %p44, %p45
      %p47 = scmp.ne.s32.totalorder %s36, %s39
      %p48 = scmp.eq.s32.totalorder %s17, 1
      %p49 = por %p47, %p48
      %p50 = scmp.ne.s32.totalorder %s39, %s40
      %p51 = scmp.eq.s32.totalorder %s17, 0
      %p52 = por %p50, %p51
      %p53 = scmp.ne.s32.totalorder %s39, %s40
      %p54 = scmp.eq.s32.totalorder %s18, 1
      %p55 = por %p53, %p54
      %p57 = scmp.ne.s32.totalorder %s40, %s56
      %p58 = scmp.eq.s32.totalorder %s18, 0
      %p59 = por %p57, %p58
      %s61 = sadd.s32 %s60, 1
      %p64 = scmp.eq.s32.totalorder %s12, 1
      %p65 = scmp.ne.s32.totalorder %s60, %s62
      %p66 = scmp.eq.s32.totalorder %s12, 0
      %p67 = por %p65, %p66
      %p68 = scmp.ne.s32.totalorder %s60, %s62
      %p69 = scmp.eq.s32.totalorder %s17, 1
      %p70 = por %p68, %p69
      %p71 = scmp.ne.s32.totalorder %s62, %s63
      %p72 = scmp.eq.s32.totalorder %s17, 0
      %p73 = por %p71, %p72
      %p74 = scmp.ne.s32.totalorder %s62, %s63
      %p75 = scmp.eq.s32.totalorder %s18, 1
      %p76 = por %p74, %p75
      %p78 = scmp.ne.s32.totalorder %s63, %s77
      %p79 = scmp.eq.s32.totalorder %s18, 0
      %p80 = por %p78, %p79
      %s82 = sadd.s32 %s81, 1
      %p85 = scmp.eq.s32.totalorder %s12, 1
      %p86 = scmp.ne.s32.totalorder %s81, %s83
      %p87 = scmp.eq.s32.totalorder %s12, 0
      %p88 = por %p86, %p87
      %p89 = scmp.ne.s32.totalorder %s81, %s83
      %p90 = scmp.eq.s32.totalorder %s17, 1
      %p91 = por %p89, %p90
      %p92 = scmp.ne.s32.totalorder %s83, %s84
      %p93 = scmp.eq.s32.totalorder %s17, 0
      %p94 = por %p92, %p93
      %p95 = scmp.ne.s32.totalorder %s83, %s84
      %p96 = scmp.eq.s32.totalorder %s18, 1
      %p97 = por %p95, %p96
      %p99 = scmp.ne.s32.totalorder %s84, %s98
      %p100 = scmp.eq.s32.totalorder %s18, 0
      %p101 = por %p99, %p100
      %s102 = ssub.s32 %s19, %s31
      %s103 = ssub.s32 %s20, %s27
      %s104 = sor.u32 %s102, %s103
      %p105 = scmp.eq.s32.totalorder %s104, 0
      %s107 = sadd.s32 %s106, 1
      %s108 = scalar_select %p105, %s106, %s107
      %p111 = pneg %p105
      %p112 = scmp.eq.s32.totalorder %s12, 1
      %p113 = por %p111, %p112
      %p114 = scmp.ne.s32.totalorder %s106, %s109
      %p115 = scmp.eq.s32.totalorder %s12, 0
      %p116 = por %p114, %p115
      %p117 = scmp.ne.s32.totalorder %s106, %s109
      %p118 = scmp.eq.s32.totalorder %s17, 1
      %p119 = por %p117, %p118
      %p120 = scmp.ne.s32.totalorder %s109, %s110
      %p121 = scmp.eq.s32.totalorder %s17, 0
      %p122 = por %p120, %p121
      %p123 = scmp.ne.s32.totalorder %s109, %s110
      %p124 = scmp.eq.s32.totalorder %s18, 1
      %p125 = por %p123, %p124
      %p127 = scmp.ne.s32.totalorder %s110, %s126
      %p128 = scmp.eq.s32.totalorder %s18, 0
      %p129 = por %p127, %p128
      %p130 = scmp.le.s32.totalorder 1, %s12
      %p131 = scmp.lt.s32.totalorder %s12, 3
      %p132 = pnand %p130, %p131
      %p133 = pneg %p132
      // Predicated region
      $region9: #{input_embedding.1} parent=5 // pred_check
        _
      $region10: #{input_embedding.1} parent=5 // pred_check_branch
        %135 = sbr.rel (%p132) target = $region12
      $region11: #{input_embedding.1} parent=5 // pred_region
        %s136 = ssub.s32 %s12, 1
        // Predicated region
        $region13: #{input_embedding.1} parent=11 // pred_check
          %p137 = pneg %p73
        $region14: #{input_embedding.1} parent=11 // pred_check_branch
          %139 = sbr.rel (%p137) target = $region16
        $region15: #{input_embedding.1} parent=11 // pred_region
          _
        $region16: #{input_embedding.1} parent=11 // pred_fallthru
          _
        // Predicated region
        $region17: #{input_embedding.1} parent=11 // pred_check
          %p140 = pneg %p94
        $region18: #{input_embedding.1} parent=11 // pred_check_branch
          %142 = sbr.rel (%p140) target = $region20
        $region19: #{input_embedding.1} parent=11 // pred_region
          _
        $region20: #{input_embedding.1} parent=11 // pred_fallthru
          _
      $region12: #{input_embedding.1} parent=5 // pred_fallthru
        _
      %p143 = scmp.lt.s32.totalorder %s12, 2
      // Predicated region
      $region21: #{input_embedding.1} parent=5 // pred_check
        %p144 = pneg %p143
      $region22: #{input_embedding.1} parent=5 // pred_check_branch
        %146 = sbr.rel (%p144) target = $region24
      $region23: #{input_embedding.1} parent=5 // pred_region
        // Predicated region
        $region25: #{input_embedding.1} parent=23 // pred_check
          %p147 = pneg %p46
        $region26: #{input_embedding.1} parent=23 // pred_check_branch
          %149 = sbr.rel (%p147) target = $region28
        $region27: #{input_embedding.1} parent=23 // pred_region
          %p150 = scmp.lt.s32.totalorder %s19, 1
          %s151 = scalar_select %p150, %s19, 1
          %p152 = scmp.lt.s32.totalorder %s20, 0
          %s153 = scalar_select %p152, %s20, 0
          %s154 = smul.addr %s151, 16
          %s155 = sadd.s32 %s153, %s154
          %s156 = smul.addr %s155, 4
          %s157 = scalar_lea.vmem %s0, %s156
        $region28: #{input_embedding.1} parent=23 // pred_fallthru
          _
      $region24: #{input_embedding.1} parent=5 // pred_fallthru
        _
      %p158 = scmp.le.s32.totalorder 1, %s12
      %p159 = scmp.lt.s32.totalorder %s12, 3
      %p160 = pnand %p158, %p159
      %p161 = pneg %p160
      // Predicated region
      $region29: #{input_embedding.1} parent=5 // pred_check
        _
      $region30: #{input_embedding.1} parent=5 // pred_check_branch
        %163 = sbr.rel (%p160) target = $region32
      $region31: #{input_embedding.1} parent=5 // pred_region
        %s164 = ssub.s32 %s12, 1
        %p165 = scmp.lt.s32.totalorder %s21, 1
        %s166 = scalar_select %p165, %s21, 1
        %p167 = scmp.lt.s32.totalorder %s22, 0
        %s168 = scalar_select %p167, %s22, 0
        %s169 = smul.addr %s166, 16
        %s170 = sadd.s32 %s168, %s169
        %s171 = smul.addr %s170, 4
        %s172 = scalar_lea.vmem %s0, %s171
        %p173 = pneg %p52
        %p174 = pneg %p49
        %p175 = pneg %p73
        %p176 = pneg %p70
        %p177 = pneg %p94
        %p178 = pneg %p91
        %p179 = pneg %p122
        %p180 = pneg %p119
        %s181 = sand.u32 %s109, 1
        %s182 = scalar_lea.sflag [#allocation3], %s181
        %s183 = sand.u32 %s109, 1
        %s184 = smul.addr %s183, 8
        %s185 = scalar_lea.vmem [#allocation2], %s184
        %p186 = scmp.lt.s32.totalorder %s21, 1
        %s187 = scalar_select %p186, %s21, 1
        %p188 = scmp.lt.s32.totalorder %s22, 0
        %s189 = scalar_select %p188, %s22, 0
        %s190 = smul.addr %s187, 16
        %s191 = sadd.s32 %s189, %s190
        %s192 = smul.addr %s191, 4
        %s193 = scalar_lea.vmem %s0, %s192
        %v195 = vld [vmem:[%s193] sm:$0xf]
        %v196 = vpack.c.bf16 %v195, %v195
        %v197 = vld [vmem:[%s1] sm:$0xff]
        %v198 = vld [vmem:[%s1 + $0x8] sm:$0xff]
        %s199 = scalar_lea.vmem %s193, 4
        %v200 = vld [vmem:[%s199] sm:$0xf]
        %v201 = vpack.c.bf16 %v200, %v200
        %s202 = scalar_lea.vmem %s1, 16
        %v203 = vld [vmem:[%s202] sm:$0xff]
        %v204 = vld [vmem:[%s202 + $0x8] sm:$0xff]
        %v207 = vunpack.c.l.b16 %v203
        %v208 = vunpack.c.h.b16 %v203
        %v209 = vunpack.c.l.b16 %v204
        %v210 = vunpack.c.h.b16 %v204
        %v211 = vpack.c.b16 %v209, %v207
        %v212 = vpack.c.b16 %v210, %v208
        %vm215 = vcmask 130048
        %v217 = vsel %vm215, %v201, 0
        %219 = vmatprep.subr.bf16.mxu0 %v212
        %220 = vmatpush1.bf16.msra.mxu0 %v211
        %221 = vmatprep.subr.bf16.mxu0 0
        %222 = vmatpush1.bf16.msra.mxu0 0
        %223 = vmatprep.subr.bf16.mxu0 0
        %224 = vmatpush1.bf16.msra.mxu0 0
        %225 = vmatprep.subr.bf16.mxu0 0
        %226 = vmatpush1.bf16.msra.mxu0 0
        %227 = vmatprep.subr.bf16.mxu0 0
        %228 = vmatpush1.bf16.msra.mxu0 0
        %229 = vmatprep.subr.bf16.mxu0 0
        %230 = vmatpush1.bf16.msra.mxu0 0
        %231 = vmatprep.subr.bf16.mxu0 0
        %232 = vmatpush1.bf16.msra.mxu0 0
        %233 = vmatprep.subr.bf16.mxu0 0
        %234 = vmatpush1.bf16.msra.mxu0 0
        %235 = vmatprep.subr.bf16.mxu0 0
        %236 = vmatpush1.bf16.msra.mxu0 0
        %237 = vmatprep.subr.bf16.mxu0 0
        %238 = vmatpush1.bf16.msra.mxu0 0
        %239 = vmatprep.subr.bf16.mxu0 0
        %240 = vmatpush1.bf16.msra.mxu0 0
        %241 = vmatprep.subr.bf16.mxu0 0
        %242 = vmatpush1.bf16.msra.mxu0 0
        %243 = vmatprep.subr.bf16.mxu0 0
        %244 = vmatpush1.bf16.msra.mxu0 0
        %245 = vmatprep.subr.bf16.mxu0 0
        %246 = vmatpush1.bf16.msra.mxu0 0
        %247 = vmatprep.subr.bf16.mxu0 0
        %248 = vmatpush1.bf16.msra.mxu0 0
        %249 = vmatprep.subr.bf16.mxu0 0
        %250 = vmatpush1.bf16.msra.mxu0 0
        %251 = vmatprep.mubr.bf16.mxu0 0
        %252 = vmatmul.mubr.bf16.gmra.mrb[0].mxu0 %v217
        %v253 = vpop.f32.mrb[0].mxu0
        %v254 = vadd.f32 0.0, %v253
        %v255 = vpop.f32.mrb[0].mxu0
        %v256 = vadd.f32 0.0, %v255
        %v257 = vpop.f32.mrb[0].mxu0
        %v258 = vpop.f32.mrb[0].mxu0
        %259 = vdwg.mxu0
        %v262 = vunpack.c.l.b16 %v197
        %v263 = vunpack.c.h.b16 %v197
        %v264 = vunpack.c.l.b16 %v198
        %v265 = vunpack.c.h.b16 %v198
        %v266 = vpack.c.b16 %v264, %v262
        %v267 = vpack.c.b16 %v265, %v263
        %v271 = vsel %vm215, %v196, 0
        %273 = vmatprep.subr.bf16.mxu0 %v267
        %274 = vmatpush1.bf16.msra.mxu0 %v266
        %275 = vmatprep.subr.bf16.mxu0 0
        %276 = vmatpush1.bf16.msra.mxu0 0
        %277 = vmatprep.subr.bf16.mxu0 0
        %278 = vmatpush1.bf16.msra.mxu0 0
        %279 = vmatprep.subr.bf16.mxu0 0
        %280 = vmatpush1.bf16.msra.mxu0 0
        %281 = vmatprep.subr.bf16.mxu0 0
        %282 = vmatpush1.bf16.msra.mxu0 0
        %283 = vmatprep.subr.bf16.mxu0 0
        %284 = vmatpush1.bf16.msra.mxu0 0
        %285 = vmatprep.subr.bf16.mxu0 0
        %286 = vmatpush1.bf16.msra.mxu0 0
        %287 = vmatprep.subr.bf16.mxu0 0
        %288 = vmatpush1.bf16.msra.mxu0 0
        %289 = vmatprep.subr.bf16.mxu0 0
        %290 = vmatpush1.bf16.msra.mxu0 0
        %291 = vmatprep.subr.bf16.mxu0 0
        %292 = vmatpush1.bf16.msra.mxu0 0
        %293 = vmatprep.subr.bf16.mxu0 0
        %294 = vmatpush1.bf16.msra.mxu0 0
        %295 = vmatprep.subr.bf16.mxu0 0
        %296 = vmatpush1.bf16.msra.mxu0 0
        %297 = vmatprep.subr.bf16.mxu0 0
        %298 = vmatpush1.bf16.msra.mxu0 0
        %299 = vmatprep.subr.bf16.mxu0 0
        %300 = vmatpush1.bf16.msra.mxu0 0
        %301 = vmatprep.subr.bf16.mxu0 0
        %302 = vmatpush1.bf16.msra.mxu0 0
        %303 = vmatprep.subr.bf16.mxu0 0
        %304 = vmatpush1.bf16.msra.mxu0 0
        %305 = vmatprep.mubr.bf16.mxu0 0
        %306 = vmatmul.mubr.bf16.gmra.mrb[0].mxu0 %v271
        %v307 = vpop.f32.mrb[0].mxu0
        %v308 = vadd.f32 %v254, %v307
        %v309 = vpop.f32.mrb[0].mxu0
        %v310 = vadd.f32 %v256, %v309
        %v311 = vpop.f32.mrb[0].mxu0
        %v312 = vpop.f32.mrb[0].mxu0
        %313 = vdwg.mxu0
        %s314 = scalar_lea.vmem %s193, 8
        %v315 = vld [vmem:[%s314] sm:$0xf]
        %v316 = vpack.c.bf16 %v315, %v315
        %s317 = scalar_lea.vmem %s1, 32
        %v318 = vld [vmem:[%s317] sm:$0xff]
        %v319 = vld [vmem:[%s317 + $0x8] sm:$0xff]
        %v322 = vunpack.c.l.b16 %v318
        %v323 = vunpack.c.h.b16 %v318
        %v324 = vunpack.c.l.b16 %v319
        %v325 = vunpack.c.h.b16 %v319
        %v326 = vpack.c.b16 %v324, %v322
        %v327 = vpack.c.b16 %v325, %v323
        %v331 = vsel %vm215, %v316, 0
        %333 = vmatprep.subr.bf16.mxu0 %v327
        %334 = vmatpush1.bf16.msra.mxu0 %v326
        %335 = vmatprep.subr.bf16.mxu0 0
        %336 = vmatpush1.bf16.msra.mxu0 0
        %337 = vmatprep.subr.bf16.mxu0 0
        %338 = vmatpush1.bf16.msra.mxu0 0
        %339 = vmatprep.subr.bf16.mxu0 0
        %340 = vmatpush1.bf16.msra.mxu0 0
        %341 = vmatprep.subr.bf16.mxu0 0
        %342 = vmatpush1.bf16.msra.mxu0 0
        %343 = vmatprep.subr.bf16.mxu0 0
        %344 = vmatpush1.bf16.msra.mxu0 0
        %345 = vmatprep.subr.bf16.mxu0 0
        %346 = vmatpush1.bf16.msra.mxu0 0
        %347 = vmatprep.subr.bf16.mxu0 0
        %348 = vmatpush1.bf16.msra.mxu0 0
        %349 = vmatprep.subr.bf16.mxu0 0
        %350 = vmatpush1.bf16.msra.mxu0 0
        %351 = vmatprep.subr.bf16.mxu0 0
        %352 = vmatpush1.bf16.msra.mxu0 0
        %353 = vmatprep.subr.bf16.mxu0 0
        %354 = vmatpush1.bf16.msra.mxu0 0
        %355 = vmatprep.subr.bf16.mxu0 0
        %356 = vmatpush1.bf16.msra.mxu0 0
        %357 = vmatprep.subr.bf16.mxu0 0
        %358 = vmatpush1.bf16.msra.mxu0 0
        %359 = vmatprep.subr.bf16.mxu0 0
        %360 = vmatpush1.bf16.msra.mxu0 0
        %361 = vmatprep.subr.bf16.mxu0 0
        %362 = vmatpush1.bf16.msra.mxu0 0
        %363 = vmatprep.subr.bf16.mxu0 0
        %364 = vmatpush1.bf16.msra.mxu0 0
        %365 = vmatprep.mubr.bf16.mxu0 0
        %366 = vmatmul.mubr.bf16.gmra.mrb[0].mxu0 %v331
        %v367 = vpop.f32.mrb[0].mxu0
        %v368 = vadd.f32 0.0, %v367
        %v369 = vpop.f32.mrb[0].mxu0
        %v370 = vadd.f32 0.0, %v369
        %v371 = vpop.f32.mrb[0].mxu0
        %v372 = vpop.f32.mrb[0].mxu0
        %373 = vdwg.mxu0
        %v374 = vadd.f32 %v308, %v368
        %v375 = vadd.f32 %v310, %v370
        %s376 = scalar_lea.vmem %s193, 12
        %v377 = vld [vmem:[%s376] sm:$0xf]
        %v378 = vpack.c.bf16 %v377, %v377
        %s379 = scalar_lea.vmem %s1, 48
        %v380 = vld [vmem:[%s379] sm:$0xff]
        %v381 = vld [vmem:[%s379 + $0x8] sm:$0xff]
        %v384 = vunpack.c.l.b16 %v380
        %v385 = vunpack.c.h.b16 %v380
        %v386 = vunpack.c.l.b16 %v381
        %v387 = vunpack.c.h.b16 %v381
        %v388 = vpack.c.b16 %v386, %v384
        %v389 = vpack.c.b16 %v387, %v385
        %v393 = vsel %vm215, %v378, 0
        %395 = vmatprep.subr.bf16.mxu0 %v389
        %396 = vmatpush1.bf16.msra.mxu0 %v388
        %397 = vmatprep.subr.bf16.mxu0 0
        %398 = vmatpush1.bf16.msra.mxu0 0
        %399 = vmatprep.subr.bf16.mxu0 0
        %400 = vmatpush1.bf16.msra.mxu0 0
        %401 = vmatprep.subr.bf16.mxu0 0
        %402 = vmatpush1.bf16.msra.mxu0 0
        %403 = vmatprep.subr.bf16.mxu0 0
        %404 = vmatpush1.bf16.msra.mxu0 0
        %405 = vmatprep.subr.bf16.mxu0 0
        %406 = vmatpush1.bf16.msra.mxu0 0
        %407 = vmatprep.subr.bf16.mxu0 0
        %408 = vmatpush1.bf16.msra.mxu0 0
        %409 = vmatprep.subr.bf16.mxu0 0
        %410 = vmatpush1.bf16.msra.mxu0 0
        %411 = vmatprep.subr.bf16.mxu0 0
        %412 = vmatpush1.bf16.msra.mxu0 0
        %413 = vmatprep.subr.bf16.mxu0 0
        %414 = vmatpush1.bf16.msra.mxu0 0
        %415 = vmatprep.subr.bf16.mxu0 0
        %416 = vmatpush1.bf16.msra.mxu0 0
        %417 = vmatprep.subr.bf16.mxu0 0
        %418 = vmatpush1.bf16.msra.mxu0 0
        %419 = vmatprep.subr.bf16.mxu0 0
        %420 = vmatpush1.bf16.msra.mxu0 0
        %421 = vmatprep.subr.bf16.mxu0 0
        %422 = vmatpush1.bf16.msra.mxu0 0
        %423 = vmatprep.subr.bf16.mxu0 0
        %424 = vmatpush1.bf16.msra.mxu0 0
        %425 = vmatprep.subr.bf16.mxu0 0
        %426 = vmatpush1.bf16.msra.mxu0 0
        %427 = vmatprep.mubr.bf16.mxu0 0
        %428 = vmatmul.mubr.bf16.gmra.mrb[0].mxu0 %v393
        %v429 = vpop.f32.mrb[0].mxu0
        %v430 = vadd.f32 0.0, %v429
        %v431 = vpop.f32.mrb[0].mxu0
        %v432 = vadd.f32 0.0, %v431
        %v433 = vpop.f32.mrb[0].mxu0
        %v434 = vpop.f32.mrb[0].mxu0
        %435 = vdwg.mxu0
        %v436 = vadd.f32 %v374, %v430
        %v437 = vadd.f32 %v375, %v432
        %s438 = scalar_lea.vmem %s193, 16
        %v439 = vld [vmem:[%s438] sm:$0xf]
        %v440 = vpack.c.bf16 %v439, %v439
        %s441 = scalar_lea.vmem %s1, 64
        %v442 = vld [vmem:[%s441] sm:$0xff]
        %v443 = vld [vmem:[%s441 + $0x8] sm:$0xff]
        %v446 = vunpack.c.l.b16 %v442
        %v447 = vunpack.c.h.b16 %v442
        %v448 = vunpack.c.l.b16 %v443
        %v449 = vunpack.c.h.b16 %v443
        %v450 = vpack.c.b16 %v448, %v446
        %v451 = vpack.c.b16 %v449, %v447
        %v455 = vsel %vm215, %v440, 0
        %457 = vmatprep.subr.bf16.mxu0 %v451
        %458 = vmatpush1.bf16.msra.mxu0 %v450
        %459 = vmatprep.subr.bf16.mxu0 0
        %460 = vmatpush1.bf16.msra.mxu0 0
        %461 = vmatprep.subr.bf16.mxu0 0
        %462 = vmatpush1.bf16.msra.mxu0 0
        %463 = vmatprep.subr.bf16.mxu0 0
        %464 = vmatpush1.bf16.msra.mxu0 0
        %465 = vmatprep.subr.bf16.mxu0 0
        %466 = vmatpush1.bf16.msra.mxu0 0
        %467 = vmatprep.subr.bf16.mxu0 0
        %468 = vmatpush1.bf16.msra.mxu0 0
        %469 = vmatprep.subr.bf16.mxu0 0
        %470 = vmatpush1.bf16.msra.mxu0 0
        %471 = vmatprep.subr.bf16.mxu0 0
        %472 = vmatpush1.bf16.msra.mxu0 0
        %473 = vmatprep.subr.bf16.mxu0 0
        %474 = vmatpush1.bf16.msra.mxu0 0
        %475 = vmatprep.subr.bf16.mxu0 0
        %476 = vmatpush1.bf16.msra.mxu0 0
        %477 = vmatprep.subr.bf16.mxu0 0
        %478 = vmatpush1.bf16.msra.mxu0 0
        %479 = vmatprep.subr.bf16.mxu0 0
        %480 = vmatpush1.bf16.msra.mxu0 0
        %481 = vmatprep.subr.bf16.mxu0 0
        %482 = vmatpush1.bf16.msra.mxu0 0
        %483 = vmatprep.subr.bf16.mxu0 0
        %484 = vmatpush1.bf16.msra.mxu0 0
        %485 = vmatprep.subr.bf16.mxu0 0
        %486 = vmatpush1.bf16.msra.mxu0 0
        %487 = vmatprep.subr.bf16.mxu0 0
        %488 = vmatpush1.bf16.msra.mxu0 0
        %489 = vmatprep.mubr.bf16.mxu0 0
        %490 = vmatmul.mubr.bf16.gmra.mrb[0].mxu0 %v455
        %v491 = vpop.f32.mrb[0].mxu0
        %v492 = vadd.f32 0.0, %v491
        %v493 = vpop.f32.mrb[0].mxu0
        %v494 = vadd.f32 0.0, %v493
        %v495 = vpop.f32.mrb[0].mxu0
        %v496 = vpop.f32.mrb[0].mxu0
        %497 = vdwg.mxu0
        %v498 = vadd.f32 %v436, %v492
        %v499 = vadd.f32 %v437, %v494
        %s500 = scalar_lea.vmem %s193, 20
        %v501 = vld [vmem:[%s500] sm:$0xf]
        %v502 = vpack.c.bf16 %v501, %v501
        %s503 = scalar_lea.vmem %s1, 80
        %v504 = vld [vmem:[%s503] sm:$0xff]
        %v505 = vld [vmem:[%s503 + $0x8] sm:$0xff]
        %v508 = vunpack.c.l.b16 %v504
        %v509 = vunpack.c.h.b16 %v504
        %v510 = vunpack.c.l.b16 %v505
        %v511 = vunpack.c.h.b16 %v505
        %v512 = vpack.c.b16 %v510, %v508
        %v513 = vpack.c.b16 %v511, %v509
        %v517 = vsel %vm215, %v502, 0
        %519 = vmatprep.subr.bf16.mxu0 %v513
        %520 = vmatpush1.bf16.msra.mxu0 %v512
        %521 = vmatprep.subr.bf16.mxu0 0
        %522 = vmatpush1.bf16.msra.mxu0 0
        %523 = vmatprep.subr.bf16.mxu0 0
        %524 = vmatpush1.bf16.msra.mxu0 0
        %525 = vmatprep.subr.bf16.mxu0 0
        %526 = vmatpush1.bf16.msra.mxu0 0
        %527 = vmatprep.subr.bf16.mxu0 0
        %528 = vmatpush1.bf16.msra.mxu0 0
        %529 = vmatprep.subr.bf16.mxu0 0
        %530 = vmatpush1.bf16.msra.mxu0 0
        %531 = vmatprep.subr.bf16.mxu0 0
        %532 = vmatpush1.bf16.msra.mxu0 0
        %533 = vmatprep.subr.bf16.mxu0 0
        %534 = vmatpush1.bf16.msra.mxu0 0
        %535 = vmatprep.subr.bf16.mxu0 0
        %536 = vmatpush1.bf16.msra.mxu0 0
        %537 = vmatprep.subr.bf16.mxu0 0
        %538 = vmatpush1.bf16.msra.mxu0 0
        %539 = vmatprep.subr.bf16.mxu0 0
        %540 = vmatpush1.bf16.msra.mxu0 0
        %541 = vmatprep.subr.bf16.mxu0 0
        %542 = vmatpush1.bf16.msra.mxu0 0
        %543 = vmatprep.subr.bf16.mxu0 0
        %544 = vmatpush1.bf16.msra.mxu0 0
        %545 = vmatprep.subr.bf16.mxu0 0
        %546 = vmatpush1.bf16.msra.mxu0 0
        %547 = vmatprep.subr.bf16.mxu0 0
        %548 = vmatpush1.bf16.msra.mxu0 0
        %549 = vmatprep.subr.bf16.mxu0 0
        %550 = vmatpush1.bf16.msra.mxu0 0
        %551 = vmatprep.mubr.bf16.mxu0 0
        %552 = vmatmul.mubr.bf16.gmra.mrb[0].mxu0 %v517
        %v553 = vpop.f32.mrb[0].mxu0
        %v554 = vadd.f32 0.0, %v553
        %v555 = vpop.f32.mrb[0].mxu0
        %v556 = vadd.f32 0.0, %v555
        %v557 = vpop.f32.mrb[0].mxu0
        %v558 = vpop.f32.mrb[0].mxu0
        %559 = vdwg.mxu0
        %v560 = vadd.f32 %v498, %v554
        %v561 = vadd.f32 %v499, %v556
        %s562 = scalar_lea.vmem %s193, 24
        %v563 = vld [vmem:[%s562] sm:$0xf]
        %v564 = vpack.c.bf16 %v563, %v563
        %s565 = scalar_lea.vmem %s1, 96
        %v566 = vld [vmem:[%s565] sm:$0xff]
        %v567 = vld [vmem:[%s565 + $0x8] sm:$0xff]
        %v570 = vunpack.c.l.b16 %v566
        %v571 = vunpack.c.h.b16 %v566
        %v572 = vunpack.c.l.b16 %v567
        %v573 = vunpack.c.h.b16 %v567
        %v574 = vpack.c.b16 %v572, %v570
        %v575 = vpack.c.b16 %v573, %v571
        %v579 = vsel %vm215, %v564, 0
        %581 = vmatprep.subr.bf16.mxu0 %v575
        %582 = vmatpush1.bf16.msra.mxu0 %v574
        %583 = vmatprep.subr.bf16.mxu0 0
        %584 = vmatpush1.bf16.msra.mxu0 0
        %585 = vmatprep.subr.bf16.mxu0 0
        %586 = vmatpush1.bf16.msra.mxu0 0
        %587 = vmatprep.subr.bf16.mxu0 0
        %588 = vmatpush1.bf16.msra.mxu0 0
        %589 = vmatprep.subr.bf16.mxu0 0
        %590 = vmatpush1.bf16.msra.mxu0 0
        %591 = vmatprep.subr.bf16.mxu0 0
        %592 = vmatpush1.bf16.msra.mxu0 0
        %593 = vmatprep.subr.bf16.mxu0 0
        %594 = vmatpush1.bf16.msra.mxu0 0
        %595 = vmatprep.subr.bf16.mxu0 0
        %596 = vmatpush1.bf16.msra.mxu0 0
        %597 = vmatprep.subr.bf16.mxu0 0
        %598 = vmatpush1.bf16.msra.mxu0 0
        %599 = vmatprep.subr.bf16.mxu0 0
        %600 = vmatpush1.bf16.msra.mxu0 0
        %601 = vmatprep.subr.bf16.mxu0 0
        %602 = vmatpush1.bf16.msra.mxu0 0
        %603 = vmatprep.subr.bf16.mxu0 0
        %604 = vmatpush1.bf16.msra.mxu0 0
        %605 = vmatprep.subr.bf16.mxu0 0
        %606 = vmatpush1.bf16.msra.mxu0 0
        %607 = vmatprep.subr.bf16.mxu0 0
        %608 = vmatpush1.bf16.msra.mxu0 0
        %609 = vmatprep.subr.bf16.mxu0 0
        %610 = vmatpush1.bf16.msra.mxu0 0
        %611 = vmatprep.subr.bf16.mxu0 0
        %612 = vmatpush1.bf16.msra.mxu0 0
        %613 = vmatprep.mubr.bf16.mxu0 0
        %614 = vmatmul.mubr.bf16.gmra.mrb[0].mxu0 %v579
        %v615 = vpop.f32.mrb[0].mxu0
        %v616 = vadd.f32 0.0, %v615
        %v617 = vpop.f32.mrb[0].mxu0
        %v618 = vadd.f32 0.0, %v617
        %v619 = vpop.f32.mrb[0].mxu0
        %v620 = vpop.f32.mrb[0].mxu0
        %621 = vdwg.mxu0
        %v622 = vadd.f32 %v560, %v616
        %v623 = vadd.f32 %v561, %v618
        %s624 = scalar_lea.vmem %s193, 28
        %v625 = vld [vmem:[%s624] sm:$0xf]
        %v626 = vpack.c.bf16 %v625, %v625
        %s627 = scalar_lea.vmem %s1, 112
        %v628 = vld [vmem:[%s627] sm:$0xff]
        %v629 = vld [vmem:[%s627 + $0x8] sm:$0xff]
        %v632 = vunpack.c.l.b16 %v628
        %v633 = vunpack.c.h.b16 %v628
        %v634 = vunpack.c.l.b16 %v629
        %v635 = vunpack.c.h.b16 %v629
        %v636 = vpack.c.b16 %v634, %v632
        %v637 = vpack.c.b16 %v635, %v633
        %v641 = vsel %vm215, %v626, 0
        %643 = vmatprep.subr.bf16.mxu0 %v637
        %644 = vmatpush1.bf16.msra.mxu0 %v636
        %645 = vmatprep.subr.bf16.mxu0 0
        %646 = vmatpush1.bf16.msra.mxu0 0
        %647 = vmatprep.subr.bf16.mxu0 0
        %648 = vmatpush1.bf16.msra.mxu0 0
        %649 = vmatprep.subr.bf16.mxu0 0
        %650 = vmatpush1.bf16.msra.mxu0 0
        %651 = vmatprep.subr.bf16.mxu0 0
        %652 = vmatpush1.bf16.msra.mxu0 0
        %653 = vmatprep.subr.bf16.mxu0 0
        %654 = vmatpush1.bf16.msra.mxu0 0
        %655 = vmatprep.subr.bf16.mxu0 0
        %656 = vmatpush1.bf16.msra.mxu0 0
        %657 = vmatprep.subr.bf16.mxu0 0
        %658 = vmatpush1.bf16.msra.mxu0 0
        %659 = vmatprep.subr.bf16.mxu0 0
        %660 = vmatpush1.bf16.msra.mxu0 0
        %661 = vmatprep.subr.bf16.mxu0 0
        %662 = vmatpush1.bf16.msra.mxu0 0
        %663 = vmatprep.subr.bf16.mxu0 0
        %664 = vmatpush1.bf16.msra.mxu0 0
        %665 = vmatprep.subr.bf16.mxu0 0
        %666 = vmatpush1.bf16.msra.mxu0 0
        %667 = vmatprep.subr.bf16.mxu0 0
        %668 = vmatpush1.bf16.msra.mxu0 0
        %669 = vmatprep.subr.bf16.mxu0 0
        %670 = vmatpush1.bf16.msra.mxu0 0
        %671 = vmatprep.subr.bf16.mxu0 0
        %672 = vmatpush1.bf16.msra.mxu0 0
        %673 = vmatprep.subr.bf16.mxu0 0
        %674 = vmatpush1.bf16.msra.mxu0 0
        %675 = vmatprep.mubr.bf16.mxu0 0
        %676 = vmatmul.mubr.bf16.gmra.mrb[0].mxu0 %v641
        %v677 = vpop.f32.mrb[0].mxu0
        %v678 = vadd.f32 0.0, %v677
        %v679 = vpop.f32.mrb[0].mxu0
        %v680 = vadd.f32 0.0, %v679
        %v681 = vpop.f32.mrb[0].mxu0
        %v682 = vpop.f32.mrb[0].mxu0
        %683 = vdwg.mxu0
        %v684 = vadd.f32 %v622, %v678
        %v685 = vadd.f32 %v623, %v680
        %s686 = scalar_lea.vmem %s193, 32
        %v687 = vld [vmem:[%s686] sm:$0xf]
        %v688 = vpack.c.bf16 %v687, %v687
        %s689 = scalar_lea.vmem %s1, 128
        %v690 = vld [vmem:[%s689] sm:$0xff]
        %v691 = vld [vmem:[%s689 + $0x8] sm:$0xff]
        %v694 = vunpack.c.l.b16 %v690
        %v695 = vunpack.c.h.b16 %v690
        %v696 = vunpack.c.l.b16 %v691
        %v697 = vunpack.c.h.b16 %v691
        %v698 = vpack.c.b16 %v696, %v694
        %v699 = vpack.c.b16 %v697, %v695
        %v703 = vsel %vm215, %v688, 0
        %705 = vmatprep.subr.bf16.mxu0 %v699
        %706 = vmatpush1.bf16.msra.mxu0 %v698
        %707 = vmatprep.subr.bf16.mxu0 0
        %708 = vmatpush1.bf16.msra.mxu0 0
        %709 = vmatprep.subr.bf16.mxu0 0
        %710 = vmatpush1.bf16.msra.mxu0 0
        %711 = vmatprep.subr.bf16.mxu0 0
        %712 = vmatpush1.bf16.msra.mxu0 0
        %713 = vmatprep.subr.bf16.mxu0 0
        %714 = vmatpush1.bf16.msra.mxu0 0
        %715 = vmatprep.subr.bf16.mxu0 0
        %716 = vmatpush1.bf16.msra.mxu0 0
        %717 = vmatprep.subr.bf16.mxu0 0
        %718 = vmatpush1.bf16.msra.mxu0 0
        %719 = vmatprep.subr.bf16.mxu0 0
        %720 = vmatpush1.bf16.msra.mxu0 0
        %721 = vmatprep.subr.bf16.mxu0 0
        %722 = vmatpush1.bf16.msra.mxu0 0
        %723 = vmatprep.subr.bf16.mxu0 0
        %724 = vmatpush1.bf16.msra.mxu0 0
        %725 = vmatprep.subr.bf16.mxu0 0
        %726 = vmatpush1.bf16.msra.mxu0 0
        %727 = vmatprep.subr.bf16.mxu0 0
        %728 = vmatpush1.bf16.msra.mxu0 0
        %729 = vmatprep.subr.bf16.mxu0 0
        %730 = vmatpush1.bf16.msra.mxu0 0
        %731 = vmatprep.subr.bf16.mxu0 0
        %732 = vmatpush1.bf16.msra.mxu0 0
        %733 = vmatprep.subr.bf16.mxu0 0
        %734 = vmatpush1.bf16.msra.mxu0 0
        %735 = vmatprep.subr.bf16.mxu0 0
        %736 = vmatpush1.bf16.msra.mxu0 0
        %737 = vmatprep.mubr.bf16.mxu0 0
        %738 = vmatmul.mubr.bf16.gmra.mrb[0].mxu0 %v703
        %v739 = vpop.f32.mrb[0].mxu0
        %v740 = vadd.f32 0.0, %v739
        %v741 = vpop.f32.mrb[0].mxu0
        %v742 = vadd.f32 0.0, %v741
        %v743 = vpop.f32.mrb[0].mxu0
        %v744 = vpop.f32.mrb[0].mxu0
        %745 = vdwg.mxu0
        %v746 = vadd.f32 %v684, %v740
        %v747 = vadd.f32 %v685, %v742
        %s748 = scalar_lea.vmem %s193, 36
        %v749 = vld [vmem:[%s748] sm:$0xf]
        %v750 = vpack.c.bf16 %v749, %v749
        %s751 = scalar_lea.vmem %s1, 144
        %v752 = vld [vmem:[%s751] sm:$0xff]
        %v753 = vld [vmem:[%s751 + $0x8] sm:$0xff]
        %v756 = vunpack.c.l.b16 %v752
        %v757 = vunpack.c.h.b16 %v752
        %v758 = vunpack.c.l.b16 %v753
        %v759 = vunpack.c.h.b16 %v753
        %v760 = vpack.c.b16 %v758, %v756
        %v761 = vpack.c.b16 %v759, %v757
        %v765 = vsel %vm215, %v750, 0
        %767 = vmatprep.subr.bf16.mxu0 %v761
        %768 = vmatpush1.bf16.msra.mxu0 %v760
        %769 = vmatprep.subr.bf16.mxu0 0
        %770 = vmatpush1.bf16.msra.mxu0 0
        %771 = vmatprep.subr.bf16.mxu0 0
        %772 = vmatpush1.bf16.msra.mxu0 0
        %773 = vmatprep.subr.bf16.mxu0 0
        %774 = vmatpush1.bf16.msra.mxu0 0
        %775 = vmatprep.subr.bf16.mxu0 0
        %776 = vmatpush1.bf16.msra.mxu0 0
        %777 = vmatprep.subr.bf16.mxu0 0
        %778 = vmatpush1.bf16.msra.mxu0 0
        %779 = vmatprep.subr.bf16.mxu0 0
        %780 = vmatpush1.bf16.msra.mxu0 0
        %781 = vmatprep.subr.bf16.mxu0 0
        %782 = vmatpush1.bf16.msra.mxu0 0
        %783 = vmatprep.subr.bf16.mxu0 0
        %784 = vmatpush1.bf16.msra.mxu0 0
        %785 = vmatprep.subr.bf16.mxu0 0
        %786 = vmatpush1.bf16.msra.mxu0 0
        %787 = vmatprep.subr.bf16.mxu0 0
        %788 = vmatpush1.bf16.msra.mxu0 0
        %789 = vmatprep.subr.bf16.mxu0 0
        %790 = vmatpush1.bf16.msra.mxu0 0
        %791 = vmatprep.subr.bf16.mxu0 0
        %792 = vmatpush1.bf16.msra.mxu0 0
        %793 = vmatprep.subr.bf16.mxu0 0
        %794 = vmatpush1.bf16.msra.mxu0 0
        %795 = vmatprep.subr.bf16.mxu0 0
        %796 = vmatpush1.bf16.msra.mxu0 0
        %797 = vmatprep.subr.bf16.mxu0 0
        %798 = vmatpush1.bf16.msra.mxu0 0
        %799 = vmatprep.mubr.bf16.mxu0 0
        %800 = vmatmul.mubr.bf16.gmra.mrb[0].mxu0 %v765
        %v801 = vpop.f32.mrb[0].mxu0
        %v802 = vadd.f32 0.0, %v801
        %v803 = vpop.f32.mrb[0].mxu0
        %v804 = vadd.f32 0.0, %v803
        %v805 = vpop.f32.mrb[0].mxu0
        %v806 = vpop.f32.mrb[0].mxu0
        %807 = vdwg.mxu0
        %v808 = vadd.f32 %v746, %v802
        %v809 = vadd.f32 %v747, %v804
        %s810 = scalar_lea.vmem %s193, 40
        %v811 = vld [vmem:[%s810] sm:$0xf]
        %v812 = vpack.c.bf16 %v811, %v811
        %s813 = scalar_lea.vmem %s1, 160
        %v814 = vld [vmem:[%s813] sm:$0xff]
        %v815 = vld [vmem:[%s813 + $0x8] sm:$0xff]
        %v818 = vunpack.c.l.b16 %v814
        %v819 = vunpack.c.h.b16 %v814
        %v820 = vunpack.c.l.b16 %v815
        %v821 = vunpack.c.h.b16 %v815
        %v822 = vpack.c.b16 %v820, %v818
        %v823 = vpack.c.b16 %v821, %v819
        %v827 = vsel %vm215, %v812, 0
        %829 = vmatprep.subr.bf16.mxu0 %v823
        %830 = vmatpush1.bf16.msra.mxu0 %v822
        %831 = vmatprep.subr.bf16.mxu0 0
        %832 = vmatpush1.bf16.msra.mxu0 0
        %833 = vmatprep.subr.bf16.mxu0 0
        %834 = vmatpush1.bf16.msra.mxu0 0
        %835 = vmatprep.subr.bf16.mxu0 0
        %836 = vmatpush1.bf16.msra.mxu0 0
        %837 = vmatprep.subr.bf16.mxu0 0
        %838 = vmatpush1.bf16.msra.mxu0 0
        %839 = vmatprep.subr.bf16.mxu0 0
        %840 = vmatpush1.bf16.msra.mxu0 0
        %841 = vmatprep.subr.bf16.mxu0 0
        %842 = vmatpush1.bf16.msra.mxu0 0
        %843 = vmatprep.subr.bf16.mxu0 0
        %844 = vmatpush1.bf16.msra.mxu0 0
        %845 = vmatprep.subr.bf16.mxu0 0
        %846 = vmatpush1.bf16.msra.mxu0 0
        %847 = vmatprep.subr.bf16.mxu0 0
        %848 = vmatpush1.bf16.msra.mxu0 0
        %849 = vmatprep.subr.bf16.mxu0 0
        %850 = vmatpush1.bf16.msra.mxu0 0
        %851 = vmatprep.subr.bf16.mxu0 0
        %852 = vmatpush1.bf16.msra.mxu0 0
        %853 = vmatprep.subr.bf16.mxu0 0
        %854 = vmatpush1.bf16.msra.mxu0 0
        %855 = vmatprep.subr.bf16.mxu0 0
        %856 = vmatpush1.bf16.msra.mxu0 0
        %857 = vmatprep.subr.bf16.mxu0 0
        %858 = vmatpush1.bf16.msra.mxu0 0
        %859 = vmatprep.subr.bf16.mxu0 0
        %860 = vmatpush1.bf16.msra.mxu0 0
        %861 = vmatprep.mubr.bf16.mxu0 0
        %862 = vmatmul.mubr.bf16.gmra.mrb[0].mxu0 %v827
        %v863 = vpop.f32.mrb[0].mxu0
        %v864 = vadd.f32 0.0, %v863
        %v865 = vpop.f32.mrb[0].mxu0
        %v866 = vadd.f32 0.0, %v865
        %v867 = vpop.f32.mrb[0].mxu0
        %v868 = vpop.f32.mrb[0].mxu0
        %869 = vdwg.mxu0
        %v870 = vadd.f32 %v808, %v864
        %v871 = vadd.f32 %v809, %v866
        %s872 = scalar_lea.vmem %s193, 44
        %v873 = vld [vmem:[%s872] sm:$0xf]
        %v874 = vpack.c.bf16 %v873, %v873
        %s875 = scalar_lea.vmem %s1, 176
        %v876 = vld [vmem:[%s875] sm:$0xff]
        %v877 = vld [vmem:[%s875 + $0x8] sm:$0xff]
        %v880 = vunpack.c.l.b16 %v876
        %v881 = vunpack.c.h.b16 %v876
        %v882 = vunpack.c.l.b16 %v877
        %v883 = vunpack.c.h.b16 %v877
        %v884 = vpack.c.b16 %v882, %v880
        %v885 = vpack.c.b16 %v883, %v881
        %v889 = vsel %vm215, %v874, 0
        %891 = vmatprep.subr.bf16.mxu0 %v885
        %892 = vmatpush1.bf16.msra.mxu0 %v884
        %893 = vmatprep.subr.bf16.mxu0 0
        %894 = vmatpush1.bf16.msra.mxu0 0
        %895 = vmatprep.subr.bf16.mxu0 0
        %896 = vmatpush1.bf16.msra.mxu0 0
        %897 = vmatprep.subr.bf16.mxu0 0
        %898 = vmatpush1.bf16.msra.mxu0 0
        %899 = vmatprep.subr.bf16.mxu0 0
        %900 = vmatpush1.bf16.msra.mxu0 0
        %901 = vmatprep.subr.bf16.mxu0 0
        %902 = vmatpush1.bf16.msra.mxu0 0
        %903 = vmatprep.subr.bf16.mxu0 0
        %904 = vmatpush1.bf16.msra.mxu0 0
        %905 = vmatprep.subr.bf16.mxu0 0
        %906 = vmatpush1.bf16.msra.mxu0 0
        %907 = vmatprep.subr.bf16.mxu0 0
        %908 = vmatpush1.bf16.msra.mxu0 0
        %909 = vmatprep.subr.bf16.mxu0 0
        %910 = vmatpush1.bf16.msra.mxu0 0
        %911 = vmatprep.subr.bf16.mxu0 0
        %912 = vmatpush1.bf16.msra.mxu0 0
        %913 = vmatprep.subr.bf16.mxu0 0
        %914 = vmatpush1.bf16.msra.mxu0 0
        %915 = vmatprep.subr.bf16.mxu0 0
        %916 = vmatpush1.bf16.msra.mxu0 0
        %917 = vmatprep.subr.bf16.mxu0 0
        %918 = vmatpush1.bf16.msra.mxu0 0
        %919 = vmatprep.subr.bf16.mxu0 0
        %920 = vmatpush1.bf16.msra.mxu0 0
        %921 = vmatprep.subr.bf16.mxu0 0
        %922 = vmatpush1.bf16.msra.mxu0 0
        %923 = vmatprep.mubr.bf16.mxu0 0
        %924 = vmatmul.mubr.bf16.gmra.mrb[0].mxu0 %v889
        %v925 = vpop.f32.mrb[0].mxu0
        %v926 = vadd.f32 0.0, %v925
        %v927 = vpop.f32.mrb[0].mxu0
        %v928 = vadd.f32 0.0, %v927
        %v929 = vpop.f32.mrb[0].mxu0
        %v930 = vpop.f32.mrb[0].mxu0
        %931 = vdwg.mxu0
        %v932 = vadd.f32 %v870, %v926
        %v933 = vadd.f32 %v871, %v928
        %s934 = scalar_lea.vmem %s193, 48
        %v935 = vld [vmem:[%s934] sm:$0xf]
        %v936 = vpack.c.bf16 %v935, %v935
        %s937 = scalar_lea.vmem %s1, 192
        %v938 = vld [vmem:[%s937] sm:$0xff]
        %v939 = vld [vmem:[%s937 + $0x8] sm:$0xff]
        %v942 = vunpack.c.l.b16 %v938
        %v943 = vunpack.c.h.b16 %v938
        %v944 = vunpack.c.l.b16 %v939
        %v945 = vunpack.c.h.b16 %v939
        %v946 = vpack.c.b16 %v944, %v942
        %v947 = vpack.c.b16 %v945, %v943
        %v951 = vsel %vm215, %v936, 0
        %953 = vmatprep.subr.bf16.mxu0 %v947
        %954 = vmatpush1.bf16.msra.mxu0 %v946
        %955 = vmatprep.subr.bf16.mxu0 0
        %956 = vmatpush1.bf16.msra.mxu0 0
        %957 = vmatprep.subr.bf16.mxu0 0
        %958 = vmatpush1.bf16.msra.mxu0 0
        %959 = vmatprep.subr.bf16.mxu0 0
        %960 = vmatpush1.bf16.msra.mxu0 0
        %961 = vmatprep.subr.bf16.mxu0 0
        %962 = vmatpush1.bf16.msra.mxu0 0
        %963 = vmatprep.subr.bf16.mxu0 0
        %964 = vmatpush1.bf16.msra.mxu0 0
        %965 = vmatprep.subr.bf16.mxu0 0
        %966 = vmatpush1.bf16.msra.mxu0 0
        %967 = vmatprep.subr.bf16.mxu0 0
        %968 = vmatpush1.bf16.msra.mxu0 0
        %969 = vmatprep.subr.bf16.mxu0 0
        %970 = vmatpush1.bf16.msra.mxu0 0
        %971 = vmatprep.subr.bf16.mxu0 0
        %972 = vmatpush1.bf16.msra.mxu0 0
        %973 = vmatprep.subr.bf16.mxu0 0
        %974 = vmatpush1.bf16.msra.mxu0 0
        %975 = vmatprep.subr.bf16.mxu0 0
        %976 = vmatpush1.bf16.msra.mxu0 0
        %977 = vmatprep.subr.bf16.mxu0 0
        %978 = vmatpush1.bf16.msra.mxu0 0
        %979 = vmatprep.subr.bf16.mxu0 0
        %980 = vmatpush1.bf16.msra.mxu0 0
        %981 = vmatprep.subr.bf16.mxu0 0
        %982 = vmatpush1.bf16.msra.mxu0 0
        %983 = vmatprep.subr.bf16.mxu0 0
        %984 = vmatpush1.bf16.msra.mxu0 0
        %985 = vmatprep.mubr.bf16.mxu0 0
        %986 = vmatmul.mubr.bf16.gmra.mrb[0].mxu0 %v951
        %v987 = vpop.f32.mrb[0].mxu0
        %v988 = vadd.f32 0.0, %v987
        %v989 = vpop.f32.mrb[0].mxu0
        %v990 = vadd.f32 0.0, %v989
        %v991 = vpop.f32.mrb[0].mxu0
        %v992 = vpop.f32.mrb[0].mxu0
        %993 = vdwg.mxu0
        %v994 = vadd.f32 %v932, %v988
        %v995 = vadd.f32 %v933, %v990
        %s996 = scalar_lea.vmem %s193, 52
        %v997 = vld [vmem:[%s996] sm:$0xf]
        %v998 = vpack.c.bf16 %v997, %v997
        %s999 = scalar_lea.vmem %s1, 208
        %v1000 = vld [vmem:[%s999] sm:$0xff]
        %v1001 = vld [vmem:[%s999 + $0x8] sm:$0xff]
        %v1004 = vunpack.c.l.b16 %v1000
        %v1005 = vunpack.c.h.b16 %v1000
        %v1006 = vunpack.c.l.b16 %v1001
        %v1007 = vunpack.c.h.b16 %v1001
        %v1008 = vpack.c.b16 %v1006, %v1004
        %v1009 = vpack.c.b16 %v1007, %v1005
        %v1013 = vsel %vm215, %v998, 0
        %1015 = vmatprep.subr.bf16.mxu0 %v1009
        %1016 = vmatpush1.bf16.msra.mxu0 %v1008
        %1017 = vmatprep.subr.bf16.mxu0 0
        %1018 = vmatpush1.bf16.msra.mxu0 0
        %1019 = vmatprep.subr.bf16.mxu0 0
        %1020 = vmatpush1.bf16.msra.mxu0 0
        %1021 = vmatprep.subr.bf16.mxu0 0
        %1022 = vmatpush1.bf16.msra.mxu0 0
        %1023 = vmatprep.subr.bf16.mxu0 0
        %1024 = vmatpush1.bf16.msra.mxu0 0
        %1025 = vmatprep.subr.bf16.mxu0 0
        %1026 = vmatpush1.bf16.msra.mxu0 0
        %1027 = vmatprep.subr.bf16.mxu0 0
        %1028 = vmatpush1.bf16.msra.mxu0 0
        %1029 = vmatprep.subr.bf16.mxu0 0
        %1030 = vmatpush1.bf16.msra.mxu0 0
        %1031 = vmatprep.subr.bf16.mxu0 0
        %1032 = vmatpush1.bf16.msra.mxu0 0
        %1033 = vmatprep.subr.bf16.mxu0 0
        %1034 = vmatpush1.bf16.msra.mxu0 0
        %1035 = vmatprep.subr.bf16.mxu0 0
        %1036 = vmatpush1.bf16.msra.mxu0 0
        %1037 = vmatprep.subr.bf16.mxu0 0
        %1038 = vmatpush1.bf16.msra.mxu0 0
        %1039 = vmatprep.subr.bf16.mxu0 0
        %1040 = vmatpush1.bf16.msra.mxu0 0
        %1041 = vmatprep.subr.bf16.mxu0 0
        %1042 = vmatpush1.bf16.msra.mxu0 0
        %1043 = vmatprep.subr.bf16.mxu0 0
        %1044 = vmatpush1.bf16.msra.mxu0 0
        %1045 = vmatprep.subr.bf16.mxu0 0
        %1046 = vmatpush1.bf16.msra.mxu0 0
        %1047 = vmatprep.mubr.bf16.mxu0 0
        %1048 = vmatmul.mubr.bf16.gmra.mrb[0].mxu0 %v1013
        %v1049 = vpop.f32.mrb[0].mxu0
        %v1050 = vadd.f32 0.0, %v1049
        %v1051 = vpop.f32.mrb[0].mxu0
        %v1052 = vadd.f32 0.0, %v1051
        %v1053 = vpop.f32.mrb[0].mxu0
        %v1054 = vpop.f32.mrb[0].mxu0
        %1055 = vdwg.mxu0
        %v1056 = vadd.f32 %v994, %v1050
        %v1057 = vadd.f32 %v995, %v1052
        %s1058 = scalar_lea.vmem %s193, 56
        %v1059 = vld [vmem:[%s1058] sm:$0xf]
        %v1060 = vpack.c.bf16 %v1059, %v1059
        %s1061 = scalar_lea.vmem %s1, 224
        %v1062 = vld [vmem:[%s1061] sm:$0xff]
        %v1063 = vld [vmem:[%s1061 + $0x8] sm:$0xff]
        %v1066 = vunpack.c.l.b16 %v1062
        %v1067 = vunpack.c.h.b16 %v1062
        %v1068 = vunpack.c.l.b16 %v1063
        %v1069 = vunpack.c.h.b16 %v1063
        %v1070 = vpack.c.b16 %v1068, %v1066
        %v1071 = vpack.c.b16 %v1069, %v1067
        %v1075 = vsel %vm215, %v1060, 0
        %1077 = vmatprep.subr.bf16.mxu0 %v1071
        %1078 = vmatpush1.bf16.msra.mxu0 %v1070
        %1079 = vmatprep.subr.bf16.mxu0 0
        %1080 = vmatpush1.bf16.msra.mxu0 0
        %1081 = vmatprep.subr.bf16.mxu0 0
        %1082 = vmatpush1.bf16.msra.mxu0 0
        %1083 = vmatprep.subr.bf16.mxu0 0
        %1084 = vmatpush1.bf16.msra.mxu0 0
        %1085 = vmatprep.subr.bf16.mxu0 0
        %1086 = vmatpush1.bf16.msra.mxu0 0
        %1087 = vmatprep.subr.bf16.mxu0 0
        %1088 = vmatpush1.bf16.msra.mxu0 0
        %1089 = vmatprep.subr.bf16.mxu0 0
        %1090 = vmatpush1.bf16.msra.mxu0 0
        %1091 = vmatprep.subr.bf16.mxu0 0
        %1092 = vmatpush1.bf16.msra.mxu0 0
        %1093 = vmatprep.subr.bf16.mxu0 0
        %1094 = vmatpush1.bf16.msra.mxu0 0
        %1095 = vmatprep.subr.bf16.mxu0 0
        %1096 = vmatpush1.bf16.msra.mxu0 0
        %1097 = vmatprep.subr.bf16.mxu0 0
        %1098 = vmatpush1.bf16.msra.mxu0 0
        %1099 = vmatprep.subr.bf16.mxu0 0
        %1100 = vmatpush1.bf16.msra.mxu0 0
        %1101 = vmatprep.subr.bf16.mxu0 0
        %1102 = vmatpush1.bf16.msra.mxu0 0
        %1103 = vmatprep.subr.bf16.mxu0 0
        %1104 = vmatpush1.bf16.msra.mxu0 0
        %1105 = vmatprep.subr.bf16.mxu0 0
        %1106 = vmatpush1.bf16.msra.mxu0 0
        %1107 = vmatprep.subr.bf16.mxu0 0
        %1108 = vmatpush1.bf16.msra.mxu0 0
        %1109 = vmatprep.mubr.bf16.mxu0 0
        %1110 = vmatmul.mubr.bf16.gmra.mrb[0].mxu0 %v1075
        %v1111 = vpop.f32.mrb[0].mxu0
        %v1112 = vadd.f32 0.0, %v1111
        %v1113 = vpop.f32.mrb[0].mxu0
        %v1114 = vadd.f32 0.0, %v1113
        %v1115 = vpop.f32.mrb[0].mxu0
        %v1116 = vpop.f32.mrb[0].mxu0
        %1117 = vdwg.mxu0
        %v1118 = vadd.f32 %v1056, %v1112
        %v1119 = vadd.f32 %v1057, %v1114
        %s1120 = scalar_lea.vmem %s193, 60
        %v1121 = vld [vmem:[%s1120] sm:$0xf]
        %v1122 = vpack.c.bf16 %v1121, %v1121
        %s1123 = scalar_lea.vmem %s1, 240
        %v1124 = vld [vmem:[%s1123] sm:$0xff]
        %v1125 = vld [vmem:[%s1123 + $0x8] sm:$0xff]
        %v1128 = vunpack.c.l.b16 %v1124
        %v1129 = vunpack.c.h.b16 %v1124
        %v1130 = vunpack.c.l.b16 %v1125
        %v1131 = vunpack.c.h.b16 %v1125
        %v1132 = vpack.c.b16 %v1130, %v1128
        %v1133 = vpack.c.b16 %v1131, %v1129
        %v1137 = vsel %vm215, %v1122, 0
        %1139 = vmatprep.subr.bf16.mxu0 %v1133
        %1140 = vmatpush1.bf16.msra.mxu0 %v1132
        %1141 = vmatprep.subr.bf16.mxu0 0
        %1142 = vmatpush1.bf16.msra.mxu0 0
        %1143 = vmatprep.subr.bf16.mxu0 0
        %1144 = vmatpush1.bf16.msra.mxu0 0
        %1145 = vmatprep.subr.bf16.mxu0 0
        %1146 = vmatpush1.bf16.msra.mxu0 0
        %1147 = vmatprep.subr.bf16.mxu0 0
        %1148 = vmatpush1.bf16.msra.mxu0 0
        %1149 = vmatprep.subr.bf16.mxu0 0
        %1150 = vmatpush1.bf16.msra.mxu0 0
        %1151 = vmatprep.subr.bf16.mxu0 0
        %1152 = vmatpush1.bf16.msra.mxu0 0
        %1153 = vmatprep.subr.bf16.mxu0 0
        %1154 = vmatpush1.bf16.msra.mxu0 0
        %1155 = vmatprep.subr.bf16.mxu0 0
        %1156 = vmatpush1.bf16.msra.mxu0 0
        %1157 = vmatprep.subr.bf16.mxu0 0
        %1158 = vmatpush1.bf16.msra.mxu0 0
        %1159 = vmatprep.subr.bf16.mxu0 0
        %1160 = vmatpush1.bf16.msra.mxu0 0
        %1161 = vmatprep.subr.bf16.mxu0 0
        %1162 = vmatpush1.bf16.msra.mxu0 0
        %1163 = vmatprep.subr.bf16.mxu0 0
        %1164 = vmatpush1.bf16.msra.mxu0 0
        %1165 = vmatprep.subr.bf16.mxu0 0
        %1166 = vmatpush1.bf16.msra.mxu0 0
        %1167 = vmatprep.subr.bf16.mxu0 0
        %1168 = vmatpush1.bf16.msra.mxu0 0
        %1169 = vmatprep.subr.bf16.mxu0 0
        %1170 = vmatpush1.bf16.msra.mxu0 0
        %1171 = vmatprep.mubr.bf16.mxu0 0
        %1172 = vmatmul.mubr.bf16.gmra.mrb[0].mxu0 %v1137
        %v1173 = vpop.f32.mrb[0].mxu0
        %v1174 = vadd.f32 0.0, %v1173
        %v1175 = vpop.f32.mrb[0].mxu0
        %v1176 = vadd.f32 0.0, %v1175
        %v1177 = vpop.f32.mrb[0].mxu0
        %v1178 = vpop.f32.mrb[0].mxu0
        %1179 = vdwg.mxu0
        %v1180 = vadd.f32 %v1118, %v1174
        %v1181 = vadd.f32 %v1119, %v1176
        %v1182 = vld [vmem:[%s2] sm:$0x3]
        %v1184 = vlaneseq
        %v1185 = vshrl.u32 %v1184, 7
        %v1186 = vsub.s32 0, %v1185
        %v1187 = vrot.slane %v1182, %v1186
        %v1188 = vlaneseq
        %v1189 = vshrl.u32 %v1188, 7
        %v1190 = vsub.s32 1, %v1189
        %v1191 = vrot.slane %v1182, %v1190
        %v1194 = vadd.f32 %v1180, %v1187
        %v1195 = vadd.f32 %v1181, %v1191
        %v1198 = vcombine.low %v1194, %v1195
        %1200 = vst [vmem:[%s185] sm:$0xff] %v1198
        %s1201 = sand.u32 %s109, 1
        %s1202 = scalar_lea.sflag [#allocation3], %s1201
        %s1203 = sand.u32 %s109, 1
        %s1204 = smul.addr %s1203, 8
        %s1205 = scalar_lea.vmem [#allocation2], %s1204
        // Predicated region
        $region33: #{input_embedding.1} parent=31 // pred_check
          %p1206 = pneg %p119
        $region34: #{input_embedding.1} parent=31 // pred_check_branch
          %1208 = sbr.rel (%p1206) target = $region36
        $region35: #{input_embedding.1} parent=31 // pred_region
          %s1210 = ssub.s32 128, 128
          %1211 = vsyncadd %s1202, %s1210
          %s1212 = smul.addr %s22, 2
          %s1213 = smul.addr %s21, 2
          %s1214 = sadd.s32 %s1212, %s1213
          %s1215 = smul.addr %s1214, 64
          %s1216 = scalar_lea.hbm %s3, %s1215
          %s1218 = sshll.u32 %s1205, 4
          %s1219 = int_to_ptr.vmem [resolvable:$true] %s1218
          %1221 = dma.vmem_to_hbm [thread:$0]  %s1219, 128, %s1216, %s1202
        $region36: #{input_embedding.1} parent=31 // pred_fallthru
          _
      $region32: #{input_embedding.1} parent=5 // pred_fallthru
        _
      %p1222 = scmp.le.s32.totalorder 2, %s12
      // Predicated region
      $region37: #{input_embedding.1} parent=5 // pred_check
        %p1223 = pneg %p1222
      $region38: #{input_embedding.1} parent=5 // pred_check_branch
        %1225 = sbr.rel (%p1223) target = $region40
      $region39: #{input_embedding.1} parent=5 // pred_region
        %s1226 = ssub.s32 %s12, 2
        // Predicated region
        $region41: #{input_embedding.1} parent=39 // pred_check
          %p1227 = pneg %p125
        $region42: #{input_embedding.1} parent=39 // pred_check_branch
          %1229 = sbr.rel (%p1227) target = $region44
        $region43: #{input_embedding.1} parent=39 // pred_region
          %s1230 = sand.u32 %s110, 1
          %s1231 = scalar_lea.sflag [#allocation3], %s1230
          %s1232 = sand.u32 %s110, 1
          %s1233 = smul.addr %s1232, 8
          %s1234 = scalar_lea.vmem [#allocation2], %s1233
          %1235 = dma.done %s1231, 128
        $region44: #{input_embedding.1} parent=39 // pred_fallthru
          _
      $region40: #{input_embedding.1} parent=5 // pred_fallthru
        _
    $region6: #{input_embedding.1} parent=1 // loop_footer
      %s16 = sadd.s32 1, %s12
    $region7: #{input_embedding.1} parent=1 // loop_footer_branch
      %11 = sbr.rel target = $region3
    $region8: #{input_embedding.1} parent=1 // loop_exit
      _
    %1236 = vsyncpa [#allocation3], 1
    %s1237 = scalar_lea.sflag [#allocation3], 1
    %1238 = vsyncpa %s1237, 1

</llo_original>
